<compile_context>
chip_gen: v7x
topology: tpu7x:2x2x1
jax: 0.10.0
libtpu: 0.0.40
codegen_flags: <defaults>
</compile_context>

<pallas_src>
import numpy as np
import jax
import jax.numpy as jnp
from jax import lax
from jax.experimental import pallas as pl
from jax.experimental.pallas import tpu as pltpu


def _round_up(x, m):
    return (x + m - 1) // m * m


def _tpu_settings():
    """Generation-aware tiling / VMEM / dtype knobs."""
    kind = ""
    try:
        kind = jax.devices()[0].device_kind.lower()
    except Exception:
        pass
    if "v5 lite" in kind or "v5e" in kind or "v5lite" in kind:
        # v5e: 16 MiB scoped default, no bf16 VPU/EUP -> f32 gates, small rows.
        return dict(gen="v5e", row_block=256, rowwise_vmem=24 << 20,
                    fused_vmem=64 << 20, bf16_gates=False)
    if "v6" in kind:
        return dict(gen="v6e", row_block=512, rowwise_vmem=48 << 20,
                    fused_vmem=64 << 20, bf16_gates=True)
    if "v7" in kind:
        # v7x: 64 MiB physical VMEM per TC -> cap below it.
        return dict(gen="v7x", row_block=512, rowwise_vmem=32 << 20,
                    fused_vmem=48 << 20, bf16_gates=True)
    return dict(gen="other", row_block=256, rowwise_vmem=32 << 20,
                fused_vmem=32 << 20, bf16_gates=False)


# ---------------------------------------------------------------------------
# Row-tiled  x @ W + b   (hoisted LSTM input projections, bf16 output)
# ---------------------------------------------------------------------------
def _matmul_bias_kernel(x_ref, w_ref, b_ref, o_ref):
    o_ref[...] = (jnp.dot(x_ref[...].astype(jnp.bfloat16), w_ref[...],
                          preferred_element_type=jnp.float32)
                  + b_ref[...]).astype(o_ref.dtype)


def _rowwise_call(kernel, x, w_bf16, b_f32, out_dtype, *,
                  row_block=256, vmem_limit=32 << 20, single_buffer=True):
    """Tile the rows of x; W / b stay resident (constant block index)."""
    n, d = x.shape
    f = w_bf16.shape[-1]
    tn = min(row_block, _round_up(n, 8))
    n_pad = _round_up(n, tn)
    if n_pad != n:
        x = jnp.pad(x, ((0, n_pad - n), (0, 0)))

    def build(single_buf):
        if single_buf:
            wspec = lambda shp: pl.BlockSpec(shp, lambda i: (0, 0),
                                             pipeline_mode=pl.Buffered(1))
        else:
            wspec = lambda shp: pl.BlockSpec(shp, lambda i: (0, 0))
        return pl.pallas_call(
            kernel,
            out_shape=jax.ShapeDtypeStruct((n_pad, f), out_dtype),
            grid_spec=pltpu.PrefetchScalarGridSpec(
                num_scalar_prefetch=0,
                grid=(n_pad // tn,),
                in_specs=[pl.BlockSpec((tn, d), lambda i: (i, 0)),
                          wspec((d, f)),
                          wspec((1, f))],
                out_specs=pl.BlockSpec((tn, f), lambda i: (i, 0)),
            ),
            compiler_params=pltpu.CompilerParams(
                dimension_semantics=("parallel",),
                vmem_limit_bytes=vmem_limit),
        )

    args = (x, w_bf16, b_f32.reshape(1, f))
    if single_buffer:
        try:
            out = build(True)(*args)
        except Exception:
            # pipeline_mode=Buffered(1) unsupported in this JAX -> default bufs
            out = build(False)(*args)
    else:
        out = build(False)(*args)
    return out[:n]


# ---------------------------------------------------------------------------
# Fused 2-layer LSTMP recurrence + residual + PSSM softmax head.
# grid = (batch_chunks ["parallel"], time_blocks ["arbitrary"]); h/c carried
# in VMEM scratch; only the truly serial matmuls remain on the critical path:
#   layer 1:  h1 @ Wh1                    (K = P)  + Wp1 projection
#   layer 2:  [y1 | h2] @ [Wx2_y; Wh2]    (K = 2P) + Wp2 projection
#   head   :  (y2 + y1) @ W_pssm  -> softmax (classes lane-padded to 128)
# ---------------------------------------------------------------------------
def _make_fused_lstmp_kernel(t_total, tt, bf16_gates, unroll):
    gate_dtype = jnp.bfloat16 if bf16_gates else jnp.float32

    def kernel(xg1_ref, cg2_ref, h10_ref, c10_ref, h20_ref, c20_ref,
               wh1_ref, wyh2_ref, wp1_ref, wp2_ref, wpssm_ref, bpssm_ref,
               pssm_ref, h1T_ref, c1T_ref, h2T_ref, c2T_ref,
               yh_sc, c1_sc, c2_sc):
        tb = pl.program_id(1)
        hdim = c1_sc.shape[-1]
        proj = yh_sc.shape[-1] // 2

        @pl.when(tb == 0)
        def _():
            yh_sc[:, :proj] = h10_ref[...].astype(jnp.bfloat16)
            yh_sc[:, proj:] = h20_ref[...].astype(jnp.bfloat16)
            c1_sc[...] = c10_ref[...]
            c2_sc[...] = c20_ref[...]

        # number of REAL timesteps covered by this time block (masked tail)
        n_valid = t_total - tb * tt

        def gates(g):
            g = g.astype(gate_dtype)
            i = jax.nn.sigmoid(g[:, 0 * hdim:1 * hdim])
            f = jax.nn.sigmoid(g[:, 1 * hdim:2 * hdim])
            cb = jnp.tanh(g[:, 2 * hdim:3 * hdim])
            o = jax.nn.sigmoid(g[:, 3 * hdim:4 * hdim])
            return i, f, cb, o

        def step(t, carry):
            @pl.when(t < n_valid)        # padded tail steps do nothing at all
            def _():
                # ---- layer 1 (x@Wx1+b1 hoisted; h1 lives bf16 in yh_sc[:, :P])
                g1 = xg1_ref[t].astype(jnp.float32) + jnp.dot(
                    yh_sc[:, :proj], wh1_ref[...],
                    preferred_element_type=jnp.float32)
                i1, f1, cb1, o1 = gates(g1)
                c1 = f1 * c1_sc[...] + i1 * cb1
                y1 = jnp.dot(
                    (o1 * jnp.tanh(c1.astype(gate_dtype))).astype(jnp.bfloat16),
                    wp1_ref[...], preferred_element_type=jnp.float32)
                c1_sc[...] = c1
                yh_sc[:, :proj] = y1.astype(jnp.bfloat16)

                # ---- layer 2: single K=2P push of [y1 | h2_prev] -------------
                g2 = cg2_ref[t].astype(jnp.float32) + jnp.dot(
                    yh_sc[...], wyh2_ref[...],
                    preferred_element_type=jnp.float32)
                i2, f2, cb2, o2 = gates(g2)
                c2 = f2 * c2_sc[...] + i2 * cb2
                y2 = jnp.dot(
                    (o2 * jnp.tanh(c2.astype(gate_dtype))).astype(jnp.bfloat16),
                    wp2_ref[...], preferred_element_type=jnp.float32)
                c2_sc[...] = c2
                yh_sc[:, proj:] = y2.astype(jnp.bfloat16)

                # ---- residual + fused PSSM head (lane-padded classes) --------
                res = (y2 + y1).astype(jnp.bfloat16)
                z = jnp.dot(res, wpssm_ref[...],
                            preferred_element_type=jnp.float32) + bpssm_ref[...]
                z = z - jnp.max(z, axis=-1, keepdims=True)
                e = jnp.exp(z)
                inv = pl.reciprocal(jnp.sum(e, axis=-1, keepdims=True),
                                    approx=True)
                pssm_ref[t] = (e * inv).astype(pssm_ref.dtype)
            return carry

        lax.fori_loop(0, tt, step, 0, unroll=unroll)

        @pl.when(tb == pl.num_programs(1) - 1)
        def _():
            h1T_ref[...] = yh_sc[:, :proj].astype(h1T_ref.dtype)
            c1T_ref[...] = c1_sc[...]
            h2T_ref[...] = yh_sc[:, proj:].astype(h2T_ref.dtype)
            c2T_ref[...] = c2_sc[...]

    return kernel


def fused_lstmp_stack(xg1, cg2, h10, c10, h20, c20,
                      wh1, wyh2, wp1, wp2, w_pssm, b_pssm, *,
                      time_block=4, batch_block=None, bf16_gates=False,
                      vmem_limit=32 << 20, single_buffer_weights=True,
                      unroll=2):
    T, Bp, G = xg1.shape
    H = G // 4
    P = h10.shape[-1]
    OC = w_pssm.shape[-1]

    tt = max(1, min(time_block, T))
    T_pad = _round_up(T, tt)
    if T_pad != T:       # padded steps are masked in-kernel (t < n_valid)
        xg1 = jnp.pad(xg1, ((0, T_pad - T), (0, 0), (0, 0)))
        cg2 = jnp.pad(cg2, ((0, T_pad - T), (0, 0), (0, 0)))

    # Megacore batch split is only worth it when each chunk keeps >=16 rows
    # (ideally >=64); for small B keep a single chunk on one core.
    bc = Bp if batch_block is None else batch_block
    assert Bp % bc == 0 and bc % 16 == 0

    grid = (Bp // bc, T_pad // tt)
    kernel = _make_fused_lstmp_kernel(T, tt, bf16_gates,
                                      max(1, min(unroll, tt)))

    def build(single_buf):
        spec_t = lambda shp: pl.BlockSpec(shp, lambda b, t: (t, b, 0))
        spec_b = lambda shp: pl.BlockSpec(shp, lambda b, t: (b, 0))
        if single_buf:
            spec_w = lambda shp: pl.BlockSpec(shp, lambda b, t: (0, 0),
                                              pipeline_mode=pl.Buffered(1))
        else:
            spec_w = lambda shp: pl.BlockSpec(shp, lambda b, t: (0, 0))
        return pl.pallas_call(
            kernel,
            out_shape=(jax.ShapeDtypeStruct((T_pad, Bp, OC), jnp.float32),
                       jax.ShapeDtypeStruct((Bp, P), jnp.float32),
                       jax.ShapeDtypeStruct((Bp, H), jnp.float32),
                       jax.ShapeDtypeStruct((Bp, P), jnp.float32),
                       jax.ShapeDtypeStruct((Bp, H), jnp.float32)),
            grid_spec=pltpu.PrefetchScalarGridSpec(
                num_scalar_prefetch=0,
                grid=grid,
                in_specs=[spec_t((tt, bc, G)),        # hoisted x@Wx1+b1 (bf16)
                          spec_t((tt, bc, G)),        # hoisted con_x@Wx2_c+b2
                          spec_b((bc, P)), spec_b((bc, H)),   # h1_0, c1_0
                          spec_b((bc, P)), spec_b((bc, H)),   # h2_0, c2_0
                          spec_w((P, G)),             # Wh1            (bf16)
                          spec_w((2 * P, G)),         # [Wx2_y; Wh2]   (bf16)
                          spec_w((H, P)),             # Wp1            (bf16)
                          spec_w((H, P)),             # Wp2            (bf16)
                          spec_w((P, OC)),            # W_pssm         (bf16)
                          spec_w((1, OC))],           # b_pssm (f32, pad -1e30)
                out_specs=[spec_t((tt, bc, OC)),      # per-step PSSM probs
                           spec_b((bc, P)), spec_b((bc, H)),
                           spec_b((bc, P)), spec_b((bc, H))],
                scratch_shapes=[pltpu.VMEM((bc, 2 * P), jnp.bfloat16),  # [h1|h2]
                                pltpu.VMEM((bc, H), jnp.float32),       # c1
                                pltpu.VMEM((bc, H), jnp.float32)]),     # c2
            compiler_params=pltpu.CompilerParams(
                dimension_semantics=("parallel", "arbitrary"),
                vmem_limit_bytes=vmem_limit),
        )

    args = (xg1, cg2, h10, c10, h20, c20, wh1, wyh2, wp1, wp2, w_pssm, b_pssm)
    if single_buffer_weights:
        try:
            outs = build(True)(*args)
        except Exception:
            # Buffered(1) not supported here -> fall back to default buffering
            outs = build(False)(*args)
    else:
        outs = build(False)(*args)

    pssm_all, h1n, c1n, h2n, c2n = outs
    return pssm_all[:T], h1n, c1n, h2n, c2n


# ---------------------------------------------------------------------------
# Inducer forward (predict_next_pssm=True, predict_next_aa=False,
# tbptt state None, processed_seqs=0, dropout_rate=0.0)
# ---------------------------------------------------------------------------
def packed_row_indices(seq_lens, row_stride):
    """Row order of torch pack_padded_sequence(enforce_sorted=True).data for a
    time-major (T, row_stride, F) tensor flattened to (T*row_stride, F)."""
    idx = []
    for t in range(max(seq_lens)):
        for b, length in enumerate(seq_lens):
            if length > t:
                idx.append(t * row_stride + b)
    return np.asarray(idx, dtype=np.int32)


def init_params(key, d1, d2, hidden, proj):
    ks = jax.random.split(key, 9)

    def w(k, shape, fan_in):
        return (jax.random.normal(k, shape, jnp.float32) /
                np.sqrt(fan_in)).astype(jnp.float32)

    d2_in = proj + d2  # LSTMP_L2 input = cat(lstmp1_output, con_x)
    return dict(
        l1=dict(wx=w(ks[0], (d1, 4 * hidden), d1),
                wh=w(ks[1], (proj, 4 * hidden), proj),
                b=w(ks[2], (4 * hidden,), hidden),
                wp=w(ks[3], (hidden, proj), hidden)),
        l2=dict(wx=w(ks[4], (d2_in, 4 * hidden), d2_in),
                wh=w(ks[5], (proj, 4 * hidden), proj),
                b=w(ks[6], (4 * hidden,), hidden),
                wp=w(ks[7], (hidden, proj), hidden)),
        w_pssm=w(ks[8], (proj, 20), proj),
        b_pssm=jnp.zeros((20,), jnp.float32),
    )


def inducer_forward(params, uncon_x, con_x, seq_lens, hidden, proj,
                    *, time_block=4, batch_block=None, settings=None):
    settings = settings or _tpu_settings()
    T, B, d1 = uncon_x.shape
    d2 = con_x.shape[-1]
    G = 4 * hidden
    bf16 = jnp.bfloat16

    # Batch padded to 16 (bf16 sublane pack) so the recurrent MXU pushes are
    # fully filled in M; padded rows carry zeros and are dropped again below.
    Bp = _round_up(B, 16)
    if Bp != B:
        uncon_x = jnp.pad(uncon_x, ((0, 0), (0, Bp - B), (0, 0)))
        con_x = jnp.pad(con_x, ((0, 0), (0, Bp - B), (0, 0)))

    # tbptt state None, processed_seqs=0  ->  zero initial states, no slicing.
    h10 = jnp.zeros((Bp, proj), jnp.float32)
    c10 = jnp.zeros((Bp, hidden), jnp.float32)
    h20 = jnp.zeros((Bp, proj), jnp.float32)
    c20 = jnp.zeros((Bp, hidden), jnp.float32)

    p1, p2 = params["l1"], params["l2"]

    # --- hoisted input projections (bf16 outputs = biggest HBM stream) ------
    xg1 = _rowwise_call(_matmul_bias_kernel, uncon_x.reshape(T * Bp, d1),
                        p1["wx"].astype(bf16), p1["b"], jnp.bfloat16,
                        row_block=settings["row_block"],
                        vmem_limit=settings["rowwise_vmem"]).reshape(T, Bp, G)
    wx2_y, wx2_c = p2["wx"][:proj], p2["wx"][proj:]
    cg2 = _rowwise_call(_matmul_bias_kernel, con_x.reshape(T * Bp, d2),
                        wx2_c.astype(bf16), p2["b"], jnp.bfloat16,
                        row_block=settings["row_block"],
                        vmem_limit=settings["rowwise_vmem"]).reshape(T, Bp, G)
    wyh2 = jnp.concatenate([wx2_y, p2["wh"]], axis=0).astype(bf16)   # (2P, 4H)

    # --- PSSM head weights: classes 20 lane-padded to 128, pad bias -1e30 ---
    n_cls = params["w_pssm"].shape[-1]
    oc = _round_up(n_cls, 128)
    w_pssm = jnp.pad(params["w_pssm"], ((0, 0), (0, oc - n_cls))).astype(bf16)
    b_pssm = jnp.pad(params["b_pssm"], (0, oc - n_cls),
                     constant_values=-1e30).astype(jnp.float32).reshape(1, oc)

    # --- fused recurrence + residual + PSSM head (single pallas_call) -------
    pssm_all, h1n, c1n, h2n, c2n = fused_lstmp_stack(
        xg1, cg2, h10, c10, h20, c20,
        p1["wh"].astype(bf16), wyh2,
        p1["wp"].astype(bf16), p2["wp"].astype(bf16),
        w_pssm, b_pssm,
        time_block=time_block, batch_block=batch_block,
        bf16_gates=settings["bf16_gates"],
        vmem_limit=settings["fused_vmem"])

    # pack_padded_sequence row order over the (T, Bp) grid (softmax already
    # applied per row inside the fused kernel, so the gather can come last).
    idx = jnp.asarray(packed_row_indices(seq_lens, Bp))
    pssm = pssm_all.reshape(T * Bp, oc)[idx, :n_cls]     # (sum(seq_lens), 20)

    # TODO(synk): returned states are the t=T-1 states for every sequence
    # (matches running LSTMPLayer over the padded tensor like the reference
    # forward); a per-sequence last-valid-timestep gather is not implemented.
    s1 = (h1n[:B], c1n[:B])
    s2 = (h2n[:B], c2n[:B])
    # predict_next_aa=False -> second return slot is a placeholder (None)
    return pssm, None, s1, s2


if __name__ == "__main__":
    # Small shapes consistent with the module's axis conventions; T=9 with
    # time_block=4 exercises the masked time-tail path.
    T, B = 9, 4
    HIDDEN, PROJ = 256, 128          # scaled-down hidden_size / projection_size
    D1 = 84                          # scaled-down (512 + 20) uncon feature dim
    D2 = 160                         # scaled-down con feature dim
    seq_lens = [9, 7, 5, 3]          # sorted descending (enforce_sorted=True)

    key = jax.random.PRNGKey(0)
    k_p, k_u, k_c = jax.random.split(key, 3)
    params = init_params(k_p, D1, D2, HIDDEN, PROJ)
    uncon_x = jax.random.normal(k_u, (T, B, D1), jnp.float32)
    con_x = jax.random.normal(k_c, (T, B, D2), jnp.float32)

    pssm, _aa, s1, s2 = inducer_forward(params, uncon_x, con_x, seq_lens,
                                        HIDDEN, PROJ, time_block=4)
    jax.block_until_ready((pssm, s1, s2))

    assert pssm.shape == (sum(seq_lens), 20)
    assert s1[0].shape == (B, PROJ) and s1[1].shape == (B, HIDDEN)
    assert s2[0].shape == (B, PROJ) and s2[1].shape == (B, HIDDEN)
    pssm_np = np.asarray(pssm)
    assert np.all(np.isfinite(pssm_np))
    assert np.allclose(pssm_np.sum(axis=-1), 1.0, atol=5e-2)
    assert np.all(np.isfinite(np.asarray(s1[0]))) and np.all(np.isfinite(np.asarray(s2[1])))
    print("KERNEL_OK")
</pallas_src>

<mosaic_0001>
module attributes {stable_mosaic.version = 11 : i64} {
  func.func @_matmul_bias_kernel(%arg0: i32, %arg1: memref<144x84xf32, #tpu.memory_space<vmem>>, %arg2: memref<84x1024xbf16, #tpu.memory_space<vmem>>, %arg3: memref<1x1024xf32, #tpu.memory_space<vmem>>, %arg4: memref<144x1024xbf16, #tpu.memory_space<vmem>>) attributes {dimension_semantics = [#tpu.dimension_semantics<parallel>], iteration_bounds = array<i64: 1>, scalar_prefetch = 0 : i64, scratch_operands = 0 : i64, tpu.core_type = #tpu.core_type<tc>, window_params = [{transform_indices = @transform_0, window_bounds = array<i64: 144, 84>}, {pipeline_mode = #tpu.pipeline_mode<synchronous>, transform_indices = @transform_1, window_bounds = array<i64: 84, 1024>}, {pipeline_mode = #tpu.pipeline_mode<synchronous>, transform_indices = @transform_2, window_bounds = array<i64: 1, 1024>}, {transform_indices = @transform_3, window_bounds = array<i64: 144, 1024>}]} {
    %c0 = arith.constant 0 : index
    %c0_0 = arith.constant 0 : index
    %0 = vector.load %arg1[%c0, %c0_0] : memref<144x84xf32, #tpu.memory_space<vmem>>, vector<144x84xf32>
    %1 = arith.truncf %0 : vector<144x84xf32> to vector<144x84xbf16>
    %c0_1 = arith.constant 0 : index
    %c0_2 = arith.constant 0 : index
    %2 = vector.load %arg2[%c0_1, %c0_2] : memref<84x1024xbf16, #tpu.memory_space<vmem>>, vector<84x1024xbf16>
    %cst = arith.constant dense<0.000000e+00> : vector<144x1024xf32>
    %3 = tpu.matmul %1, %2, %cst {dimension_numbers = #tpu.dot_dimension_numbers<[1], [0], [0], [1], [0, 0, 1, 1], [], []>} : vector<144x84xbf16>, vector<84x1024xbf16>, vector<144x1024xf32> -> vector<144x1024xf32>
    %c0_3 = arith.constant 0 : index
    %c0_4 = arith.constant 0 : index
    %4 = vector.load %arg3[%c0_3, %c0_4] : memref<1x1024xf32, #tpu.memory_space<vmem>>, vector<1x1024xf32>
    %5 = vector.broadcast %4 : vector<1x1024xf32> to vector<144x1024xf32>
    %6 = arith.addf %3, %5 : vector<144x1024xf32>
    %7 = arith.truncf %6 : vector<144x1024xf32> to vector<144x1024xbf16>
    %c0_5 = arith.constant 0 : index
    %c0_6 = arith.constant 0 : index
    %8 = vector.load %arg4[%c0_5, %c0_6] : memref<144x1024xbf16, #tpu.memory_space<vmem>>, vector<144x1024xbf16>
    tpu.vector_store %arg4[%c0_5, %c0_6], %7 {strides = array<i32>} : memref<144x1024xbf16, #tpu.memory_space<vmem>>, vector<144x1024xbf16>,
    return
  }
  func.func @transform_0(%arg0: i32) -> (i32, i32) {
    %c0_i32 = arith.constant 0 : i32
    %c0_i32_0 = arith.constant 0 : i32
    return %arg0, %c0_i32 : i32, i32
  }
  func.func @transform_1(%arg0: i32) -> (i32, i32) {
    %c0_i32 = arith.constant 0 : i32
    %c0_i32_0 = arith.constant 0 : i32
    %c0_i32_1 = arith.constant 0 : i32
    return %c0_i32, %c0_i32_0 : i32, i32
  }
  func.func @transform_2(%arg0: i32) -> (i32, i32) {
    %c0_i32 = arith.constant 0 : i32
    %c0_i32_0 = arith.constant 0 : i32
    %c0_i32_1 = arith.constant 0 : i32
    return %c0_i32, %c0_i32_0 : i32, i32
  }
  func.func @transform_3(%arg0: i32) -> (i32, i32) {
    %c0_i32 = arith.constant 0 : i32
    %c0_i32_0 = arith.constant 0 : i32
    return %arg0, %c0_i32 : i32, i32
  }
}

module attributes {stable_mosaic.version = 11 : i64} {
  func.func @_matmul_bias_kernel(%arg0: i32, %arg1: memref<144x84xf32, #tpu.memory_space<vmem>>, %arg2: memref<84x1024xbf16, #tpu.memory_space<vmem>>, %arg3: memref<1x1024xf32, #tpu.memory_space<vmem>>, %arg4: memref<144x1024xbf16, #tpu.memory_space<vmem>>) attributes {dimension_semantics = [#tpu.dimension_semantics<parallel>], iteration_bounds = array<i64: 1>, scalar_prefetch = 0 : i64, scratch_operands = 0 : i64, tpu.core_type = #tpu.core_type<tc>, window_params = [{transform_indices = @transform_0, window_bounds = array<i64: 144, 84>}, {pipeline_mode = #tpu.pipeline_mode<synchronous>, transform_indices = @transform_1, window_bounds = array<i64: 84, 1024>}, {pipeline_mode = #tpu.pipeline_mode<synchronous>, transform_indices = @transform_2, window_bounds = array<i64: 1, 1024>}, {transform_indices = @transform_3, window_bounds = array<i64: 144, 1024>}]} {
    %c0 = arith.constant 0 : index
    %c0_0 = arith.constant 0 : index
    %0 = vector.load %arg1[%c0, %c0_0] : memref<144x84xf32, #tpu.memory_space<vmem>>, vector<144x84xf32>
    %1 = arith.truncf %0 : vector<144x84xf32> to vector<144x84xbf16>
    %c0_1 = arith.constant 0 : index
    %c0_2 = arith.constant 0 : index
    %2 = vector.load %arg2[%c0_1, %c0_2] : memref<84x1024xbf16, #tpu.memory_space<vmem>>, vector<84x1024xbf16>
    %cst = arith.constant dense<0.000000e+00> : vector<144x1024xf32>
    %3 = tpu.matmul %1, %2, %cst {dimension_numbers = #tpu.dot_dimension_numbers<[1], [0], [0], [1], [0, 0, 1, 1], [], []>} : vector<144x84xbf16>, vector<84x1024xbf16>, vector<144x1024xf32> -> vector<144x1024xf32>
    %c0_3 = arith.constant 0 : index
    %c0_4 = arith.constant 0 : index
    %4 = vector.load %arg3[%c0_3, %c0_4] : memref<1x1024xf32, #tpu.memory_space<vmem>>, vector<1x1024xf32>
    %5 = vector.broadcast %4 : vector<1x1024xf32> to vector<144x1024xf32>
    %6 = arith.addf %3, %5 : vector<144x1024xf32>
    %7 = arith.truncf %6 : vector<144x1024xf32> to vector<144x1024xbf16>
    %c0_5 = arith.constant 0 : index
    %c0_6 = arith.constant 0 : index
    %8 = vector.load %arg4[%c0_5, %c0_6] : memref<144x1024xbf16, #tpu.memory_space<vmem>>, vector<144x1024xbf16>
    tpu.vector_store %arg4[%c0_5, %c0_6], %7 {strides = array<i32>} : memref<144x1024xbf16, #tpu.memory_space<vmem>>, vector<144x1024xbf16>,
    return
  }
  func.func @transform_0(%arg0: i32) -> (i32, i32) {
    %c0_i32 = arith.constant 0 : i32
    %c0_i32_0 = arith.constant 0 : i32
    return %arg0, %c0_i32 : i32, i32
  }
  func.func @transform_1(%arg0: i32) -> (i32, i32) {
    %c0_i32 = arith.constant 0 : i32
    %c0_i32_0 = arith.constant 0 : i32
    %c0_i32_1 = arith.constant 0 : i32
    return %c0_i32, %c0_i32_0 : i32, i32
  }
  func.func @transform_2(%arg0: i32) -> (i32, i32) {
    %c0_i32 = arith.constant 0 : i32
    %c0_i32_0 = arith.constant 0 : i32
    %c0_i32_1 = arith.constant 0 : i32
    return %c0_i32, %c0_i32_0 : i32, i32
  }
  func.func @transform_3(%arg0: i32) -> (i32, i32) {
    %c0_i32 = arith.constant 0 : i32
    %c0_i32_0 = arith.constant 0 : i32
    return %arg0, %c0_i32 : i32, i32
  }
}

</mosaic_0001>

<llo_original>
// kernel: tpu_custom_call.1
$region0: #{tpu_custom_call.1}
  #allocation0 [shape = 'u32[]', space=smem, size = 0x4, offset = 0x4, fixed_abs, tag = 'smem constant byte address 0x4 - core index']
  #allocation1 [shape = 'u32[144,128]{1,0:T(1,128)}', space=vmem, size = 0x12000, scoped, tag = 'internal scratch']
  %s0 = inlined_call_operand.hbm [shape: f32[144,84], index: 0, kind: input, shape index: {}]
  %s1 = inlined_call_operand.hbm [shape: bf16[84,1024], index: 1, kind: input, shape index: {}]
  %s2 = inlined_call_operand.hbm [shape: f32[1,1024], index: 2, kind: input, shape index: {}]
  %s3 = inlined_call_operand.hbm [shape: bf16[144,1024], index: 3, kind: output, shape index: {}]
  %s4 = sld [smem:[#allocation0]]
  $region34: #{tpu_custom_call.1} parent=0
    _
  %s6 = ssub.s32 1, %s4
  %s7 = scalar_select 0, %s6, %s4
  $region1: #{tpu_custom_call.1} parent=0
    #allocation2 [shape = 'u8[73728]{0}', space=vmem, size = 0x12000, scoped, tag = 'input window, operand 0, single buffered']
    #allocation3 [shape = 's32[1]{0}', space=sflag, size = 0x4, scoped, tag = 'scoped memory for tpu_custom_call.1']
    #allocation4 [shape = 's32[1]{0}', space=sflag, size = 0x4, scoped, tag = 'scoped memory for tpu_custom_call.1']
    #allocation5 [shape = 'u8[180224]{0}', space=vmem, size = 0x2c000, scoped, tag = 'input window, operand 1, single buffered']
    #allocation6 [shape = 's32[1]{0}', space=sflag, size = 0x4, scoped, tag = 'scoped memory for tpu_custom_call.1']
    #allocation7 [shape = 'u8[4096]{0}', space=vmem, size = 0x1000, scoped, tag = 'input window, operand 2, single buffered']
    #allocation8 [shape = 'u8[294912]{0}', space=vmem, size = 0x48000, scoped, tag = 'output window, operand 0, single buffered']
    %8 = vsyncpa [#allocation3], 0
    %9 = vsyncpa [#allocation6], 0
    %10 = vsyncpa [#allocation4], 0
    // Predicated region
    $region2: #{tpu_custom_call.1} parent=1 // pred_check
      _
    $region3: #{tpu_custom_call.1} parent=1 // pred_check_branch
      %12 = sbr.rel (0) target = $region5
    $region4: #{tpu_custom_call.1} parent=1 // pred_region
      %s14 = ssub.s32 2304, 2304
      %15 = vsyncadd [#allocation3], %s14
      %s16 = sshll.u32 [#allocation2], 4
      %s17 = int_to_ptr.vmem [resolvable:$true] %s16
      %22 = dma.hbm_to_vmem [thread:$0]  %s0, 2304, %s17, [#allocation3], 128, 128, 8
    $region5: #{tpu_custom_call.1} parent=1 // pred_fallthru
      _
    // Predicated region
    $region6: #{tpu_custom_call.1} parent=1 // pred_check
      _
    $region7: #{tpu_custom_call.1} parent=1 // pred_check_branch
      %24 = sbr.rel (0) target = $region9
    $region8: #{tpu_custom_call.1} parent=1 // pred_region
      %s26 = ssub.s32 5632, 5632
      %27 = vsyncadd [#allocation6], %s26
      %s28 = sshll.u32 [#allocation5], 4
      %s29 = int_to_ptr.vmem [resolvable:$true] %s28
      %34 = dma.hbm_to_vmem [thread:$0]  %s1, 5632, %s29, [#allocation6], 512, 512, 32
    $region9: #{tpu_custom_call.1} parent=1 // pred_fallthru
      _
    // Predicated region
    $region10: #{tpu_custom_call.1} parent=1 // pred_check
      _
    $region11: #{tpu_custom_call.1} parent=1 // pred_check_branch
      %36 = sbr.rel (0) target = $region13
    $region12: #{tpu_custom_call.1} parent=1 // pred_region
      %s38 = ssub.s32 128, 128
      %39 = vsyncadd [#allocation6], %s38
      %s41 = sshll.u32 [#allocation7], 4
      %s42 = int_to_ptr.vmem [resolvable:$true] %s41
      %44 = dma.hbm_to_vmem [thread:$0]  %s2, 128, %s42, [#allocation6]
    $region13: #{tpu_custom_call.1} parent=1 // pred_fallthru
      _
    // Predicated region
    $region14: #{tpu_custom_call.1} parent=1 // pred_check
      _
    $region15: #{tpu_custom_call.1} parent=1 // pred_check_branch
      %46 = sbr.rel (0) target = $region17
    $region16: #{tpu_custom_call.1} parent=1 // pred_region
      %47 = dma.done [#allocation3], 2304
    $region17: #{tpu_custom_call.1} parent=1 // pred_fallthru
      _
    // Predicated region
    $region18: #{tpu_custom_call.1} parent=1 // pred_check
      _
    $region19: #{tpu_custom_call.1} parent=1 // pred_check_branch
      %49 = sbr.rel (0) target = $region21
    $region20: #{tpu_custom_call.1} parent=1 // pred_region
      %50 = dma.done [#allocation6], 5632
    $region21: #{tpu_custom_call.1} parent=1 // pred_fallthru
      _
    // Predicated region
    $region22: #{tpu_custom_call.1} parent=1 // pred_check
      _
    $region23: #{tpu_custom_call.1} parent=1 // pred_check_branch
      %52 = sbr.rel (0) target = $region25
    $region24: #{tpu_custom_call.1} parent=1 // pred_region
      %53 = dma.done [#allocation6], 128
    $region25: #{tpu_custom_call.1} parent=1 // pred_fallthru
      _
    %v55 = vld [vmem:[#allocation2] sm:$0xff]
    %v56 = vld [vmem:[#allocation2 + $0x8] sm:$0xff]
    %v57 = vld [vmem:[#allocation2 + $0x10] sm:$0xff]
    %v58 = vld [vmem:[#allocation2 + $0x18] sm:$0xff]
    %v59 = vld [vmem:[#allocation2 + $0x20] sm:$0xff]
    %v60 = vld [vmem:[#allocation2 + $0x28] sm:$0xff]
    %v61 = vld [vmem:[#allocation2 + $0x30] sm:$0xff]
    %v62 = vld [vmem:[#allocation2 + $0x38] sm:$0xff]
    %v63 = vld [vmem:[#allocation2 + $0x40] sm:$0xff]
    %v64 = vld [vmem:[#allocation2 + $0x48] sm:$0xff]
    %v65 = vld [vmem:[#allocation2 + $0x50] sm:$0xff]
    %v66 = vld [vmem:[#allocation2 + $0x58] sm:$0xff]
    %v67 = vld [vmem:[#allocation2 + $0x60] sm:$0xff]
    %v68 = vld [vmem:[#allocation2 + $0x68] sm:$0xff]
    %v69 = vld [vmem:[#allocation2 + $0x70] sm:$0xff]
    %v70 = vld [vmem:[#allocation2 + $0x78] sm:$0xff]
    %v71 = vld [vmem:[#allocation2 + $0x80] sm:$0xff]
    %v72 = vld [vmem:[#allocation2 + $0x88] sm:$0xff]
    %v73 = vpack.c.bf16 %v56, %v55
    %v74 = vpack.c.bf16 %v58, %v57
    %v75 = vpack.c.bf16 %v60, %v59
    %v76 = vpack.c.bf16 %v62, %v61
    %v77 = vpack.c.bf16 %v64, %v63
    %v78 = vpack.c.bf16 %v66, %v65
    %v79 = vpack.c.bf16 %v68, %v67
    %v80 = vpack.c.bf16 %v70, %v69
    %v81 = vpack.c.bf16 %v72, %v71
    %v82 = vld [vmem:[#allocation5] sm:$0xff]
    %v83 = vld [vmem:[#allocation5 + $0x8] sm:$0xff]
    %v84 = vld [vmem:[#allocation5 + $0x10] sm:$0xff]
    %v85 = vld [vmem:[#allocation5 + $0x18] sm:$0xff]
    %v86 = vld [vmem:[#allocation5 + $0x20] sm:$0xff]
    %v87 = vld [vmem:[#allocation5 + $0x28] sm:$0xff]
    %v88 = vld [vmem:[#allocation5 + $0x30] sm:$0xff]
    %v89 = vld [vmem:[#allocation5 + $0x38] sm:$0xff]
    %v90 = vld [vmem:[#allocation5 + $0x40] sm:$0xff]
    %v91 = vld [vmem:[#allocation5 + $0x48] sm:$0xff]
    %v92 = vld [vmem:[#allocation5 + $0x50] sm:$0xff]
    %v93 = vld [vmem:[#allocation5 + $0x58] sm:$0xff]
    %v94 = vld [vmem:[#allocation5 + $0x60] sm:$0xff]
    %v95 = vld [vmem:[#allocation5 + $0x68] sm:$0xff]
    %v96 = vld [vmem:[#allocation5 + $0x70] sm:$0xff]
    %v97 = vld [vmem:[#allocation5 + $0x78] sm:$0xff]
    %v98 = vld [vmem:[#allocation5 + $0x80] sm:$0xff]
    %v99 = vld [vmem:[#allocation5 + $0x88] sm:$0xff]
    %v100 = vld [vmem:[#allocation5 + $0x90] sm:$0xff]
    %v101 = vld [vmem:[#allocation5 + $0x98] sm:$0xff]
    %v102 = vld [vmem:[#allocation5 + $0xa0] sm:$0xff]
    %v103 = vld [vmem:[#allocation5 + $0xa8] sm:$0xff]
    %v104 = vld [vmem:[#allocation5 + $0xb0] sm:$0xff]
    %v105 = vld [vmem:[#allocation5 + $0xb8] sm:$0xff]
    %v106 = vld [vmem:[#allocation5 + $0xc0] sm:$0xff]
    %v107 = vld [vmem:[#allocation5 + $0xc8] sm:$0xff]
    %v108 = vld [vmem:[#allocation5 + $0xd0] sm:$0xff]
    %v109 = vld [vmem:[#allocation5 + $0xd8] sm:$0xff]
    %v110 = vld [vmem:[#allocation5 + $0xe0] sm:$0xff]
    %v111 = vld [vmem:[#allocation5 + $0xe8] sm:$0xff]
    %v112 = vld [vmem:[#allocation5 + $0xf0] sm:$0xff]
    %v113 = vld [vmem:[#allocation5 + $0xf8] sm:$0xff]
    %v114 = vld [vmem:[#allocation5 + $0x100] sm:$0xff]
    %v115 = vld [vmem:[#allocation5 + $0x108] sm:$0xff]
    %v116 = vld [vmem:[#allocation5 + $0x110] sm:$0xff]
    %v117 = vld [vmem:[#allocation5 + $0x118] sm:$0xff]
    %v118 = vld [vmem:[#allocation5 + $0x120] sm:$0xff]
    %v119 = vld [vmem:[#allocation5 + $0x128] sm:$0xff]
    %v120 = vld [vmem:[#allocation5 + $0x130] sm:$0xff]
    %v121 = vld [vmem:[#allocation5 + $0x138] sm:$0xff]
    %v122 = vld [vmem:[#allocation5 + $0x140] sm:$0x33]
    %v123 = vld [vmem:[#allocation5 + $0x148] sm:$0x33]
    %v124 = vld [vmem:[#allocation5 + $0x150] sm:$0x33]
    %v125 = vld [vmem:[#allocation5 + $0x158] sm:$0x33]
    %v126 = vld [vmem:[#allocation7] sm:$0xff]
    %v128 = vlaneseq
    %v129 = vshrl.u32 %v128, 7
    %v130 = vsub.s32 0, %v129
    %v131 = vrot.slane %v126, %v130
    %v132 = vlaneseq
    %v133 = vshrl.u32 %v132, 7
    %v134 = vsub.s32 1, %v133
    %v135 = vrot.slane %v126, %v134
    %v136 = vlaneseq
    %v137 = vshrl.u32 %v136, 7
    %v138 = vsub.s32 2, %v137
    %v139 = vrot.slane %v126, %v138
    %v140 = vlaneseq
    %v141 = vshrl.u32 %v140, 7
    %v142 = vsub.s32 3, %v141
    %v143 = vrot.slane %v126, %v142
    %v144 = vlaneseq
    %v145 = vshrl.u32 %v144, 7
    %v146 = vsub.s32 4, %v145
    %v147 = vrot.slane %v126, %v146
    %v148 = vlaneseq
    %v149 = vshrl.u32 %v148, 7
    %v150 = vsub.s32 5, %v149
    %v151 = vrot.slane %v126, %v150
    %v152 = vlaneseq
    %v153 = vshrl.u32 %v152, 7
    %v154 = vsub.s32 6, %v153
    %v155 = vrot.slane %v126, %v154
    %v156 = vlaneseq
    %v157 = vshrl.u32 %v156, 7
    %v158 = vsub.s32 7, %v157
    %v159 = vrot.slane %v126, %v158
    %v212 = vunpack.c.l.b16 %v82
    %v213 = vunpack.c.h.b16 %v82
    %v214 = vunpack.c.l.b16 %v83
    %v215 = vunpack.c.h.b16 %v83
    %v216 = vunpack.c.l.b16 %v84
    %v217 = vunpack.c.h.b16 %v84
    %v218 = vunpack.c.l.b16 %v85
    %v219 = vunpack.c.h.b16 %v85
    %v220 = vunpack.c.l.b16 %v86
    %v221 = vunpack.c.h.b16 %v86
    %v222 = vunpack.c.l.b16 %v87
    %v223 = vunpack.c.h.b16 %v87
    %v224 = vunpack.c.l.b16 %v88
    %v225 = vunpack.c.h.b16 %v88
    %v226 = vunpack.c.l.b16 %v89
    %v227 = vunpack.c.h.b16 %v89
    %v228 = vunpack.c.l.b16 %v90
    %v229 = vunpack.c.h.b16 %v90
    %v230 = vunpack.c.l.b16 %v91
    %v231 = vunpack.c.h.b16 %v91
    %v232 = vunpack.c.l.b16 %v92
    %v233 = vunpack.c.h.b16 %v92
    %v234 = vunpack.c.l.b16 %v93
    %v235 = vunpack.c.h.b16 %v93
    %v236 = vunpack.c.l.b16 %v94
    %v237 = vunpack.c.h.b16 %v94
    %v238 = vunpack.c.l.b16 %v95
    %v239 = vunpack.c.h.b16 %v95
    %v240 = vunpack.c.l.b16 %v96
    %v241 = vunpack.c.h.b16 %v96
    %v242 = vunpack.c.l.b16 %v97
    %v243 = vunpack.c.h.b16 %v97
    %v244 = vunpack.c.l.b16 %v98
    %v245 = vunpack.c.h.b16 %v98
    %v246 = vunpack.c.l.b16 %v99
    %v247 = vunpack.c.h.b16 %v99
    %v248 = vunpack.c.l.b16 %v100
    %v249 = vunpack.c.h.b16 %v100
    %v250 = vunpack.c.l.b16 %v101
    %v251 = vunpack.c.h.b16 %v101
    %v252 = vunpack.c.l.b16 %v102
    %v253 = vunpack.c.h.b16 %v102
    %v254 = vunpack.c.l.b16 %v103
    %v255 = vunpack.c.h.b16 %v103
    %v256 = vunpack.c.l.b16 %v104
    %v257 = vunpack.c.h.b16 %v104
    %v258 = vunpack.c.l.b16 %v105
    %v259 = vunpack.c.h.b16 %v105
    %v260 = vunpack.c.l.b16 %v106
    %v261 = vunpack.c.h.b16 %v106
    %v262 = vunpack.c.l.b16 %v107
    %v263 = vunpack.c.h.b16 %v107
    %v264 = vunpack.c.l.b16 %v108
    %v265 = vunpack.c.h.b16 %v108
    %v266 = vunpack.c.l.b16 %v109
    %v267 = vunpack.c.h.b16 %v109
    %v268 = vunpack.c.l.b16 %v110
    %v269 = vunpack.c.h.b16 %v110
    %v270 = vunpack.c.l.b16 %v111
    %v271 = vunpack.c.h.b16 %v111
    %v272 = vunpack.c.l.b16 %v112
    %v273 = vunpack.c.h.b16 %v112
    %v274 = vunpack.c.l.b16 %v113
    %v275 = vunpack.c.h.b16 %v113
    %v276 = vunpack.c.l.b16 %v114
    %v277 = vunpack.c.h.b16 %v114
    %v278 = vunpack.c.l.b16 %v115
    %v279 = vunpack.c.h.b16 %v115
    %v280 = vunpack.c.l.b16 %v116
    %v281 = vunpack.c.h.b16 %v116
    %v282 = vunpack.c.l.b16 %v117
    %v283 = vunpack.c.h.b16 %v117
    %v284 = vunpack.c.l.b16 %v118
    %v285 = vunpack.c.h.b16 %v118
    %v286 = vunpack.c.l.b16 %v119
    %v287 = vunpack.c.h.b16 %v119
    %v288 = vunpack.c.l.b16 %v120
    %v289 = vunpack.c.h.b16 %v120
    %v290 = vunpack.c.l.b16 %v121
    %v291 = vunpack.c.h.b16 %v121
    %v292 = vunpack.c.l.b16 %v122
    %v293 = vunpack.c.h.b16 %v122
    %v294 = vunpack.c.l.b16 %v123
    %v295 = vunpack.c.h.b16 %v123
    %v296 = vunpack.c.l.b16 %v124
    %v297 = vunpack.c.h.b16 %v124
    %v298 = vunpack.c.l.b16 %v125
    %v299 = vunpack.c.h.b16 %v125
    %v300 = vpack.c.b16 %v220, %v212
    %v301 = vpack.c.b16 %v221, %v213
    %v302 = vpack.c.b16 %v222, %v214
    %v303 = vpack.c.b16 %v223, %v215
    %v304 = vpack.c.b16 %v224, %v216
    %v305 = vpack.c.b16 %v225, %v217
    %v306 = vpack.c.b16 %v226, %v218
    %v307 = vpack.c.b16 %v227, %v219
    %v308 = vpack.c.b16 %v236, %v228
    %v309 = vpack.c.b16 %v237, %v229
    %v310 = vpack.c.b16 %v238, %v230
    %v311 = vpack.c.b16 %v239, %v231
    %v312 = vpack.c.b16 %v240, %v232
    %v313 = vpack.c.b16 %v241, %v233
    %v314 = vpack.c.b16 %v242, %v234
    %v315 = vpack.c.b16 %v243, %v235
    %v316 = vpack.c.b16 %v252, %v244
    %v317 = vpack.c.b16 %v253, %v245
    %v318 = vpack.c.b16 %v254, %v246
    %v319 = vpack.c.b16 %v255, %v247
    %v320 = vpack.c.b16 %v256, %v248
    %v321 = vpack.c.b16 %v257, %v249
    %v322 = vpack.c.b16 %v258, %v250
    %v323 = vpack.c.b16 %v259, %v251
    %v324 = vpack.c.b16 %v268, %v260
    %v325 = vpack.c.b16 %v269, %v261
    %v326 = vpack.c.b16 %v270, %v262
    %v327 = vpack.c.b16 %v271, %v263
    %v328 = vpack.c.b16 %v272, %v264
    %v329 = vpack.c.b16 %v273, %v265
    %v330 = vpack.c.b16 %v274, %v266
    %v331 = vpack.c.b16 %v275, %v267
    %v332 = vpack.c.b16 %v284, %v276
    %v333 = vpack.c.b16 %v285, %v277
    %v334 = vpack.c.b16 %v286, %v278
    %v335 = vpack.c.b16 %v287, %v279
    %v336 = vpack.c.b16 %v288, %v280
    %v337 = vpack.c.b16 %v289, %v281
    %v338 = vpack.c.b16 %v290, %v282
    %v339 = vpack.c.b16 %v291, %v283
    %v340 = vpack.c.b16 %v292, %v292
    %v341 = vpack.c.b16 %v293, %v293
    %v342 = vpack.c.b16 %v294, %v294
    %v343 = vpack.c.b16 %v295, %v295
    %v344 = vpack.c.b16 %v296, %v296
    %v345 = vpack.c.b16 %v297, %v297
    %v346 = vpack.c.b16 %v298, %v298
    %v347 = vpack.c.b16 %v299, %v299
    %vm388 = vcmask 687104
    %v390 = vsel %vm388, %v73, 0
    %v393 = vsel %vm388, %v74, 0
    %v396 = vsel %vm388, %v75, 0
    %v399 = vsel %vm388, %v76, 0
    %v402 = vsel %vm388, %v77, 0
    %v405 = vsel %vm388, %v78, 0
    %v408 = vsel %vm388, %v79, 0
    %v411 = vsel %vm388, %v80, 0
    %v414 = vsel %vm388, %v81, 0
    %vm416 = vcmask 1041408
    %v418 = vsel %vm416, %v340, 0
    %v421 = vsel %vm416, %v341, 0
    %v424 = vsel %vm416, %v342, 0
    %v427 = vsel %vm416, %v343, 0
    %v430 = vsel %vm416, %v344, 0
    %v433 = vsel %vm416, %v345, 0
    %v436 = vsel %vm416, %v346, 0
    %v439 = vsel %vm416, %v347, 0
    %441 = vmatprep.subr.bf16.mxu0 %v301
    %442 = vmatpush1.bf16.msra.mxu0 %v300
    %443 = vmatprep.subr.bf16.mxu0 %v309
    %444 = vmatpush1.bf16.msra.mxu0 %v308
    %445 = vmatprep.subr.bf16.mxu0 %v317
    %446 = vmatpush1.bf16.msra.mxu0 %v316
    %447 = vmatprep.subr.bf16.mxu0 %v325
    %448 = vmatpush1.bf16.msra.mxu0 %v324
    %449 = vmatprep.subr.bf16.mxu0 %v333
    %450 = vmatpush1.bf16.msra.mxu0 %v332
    %451 = vmatprep.subr.bf16.mxu0 %v421
    %452 = vmatpush1.bf16.msra.mxu0 %v418
    %453 = vmatprep.subr.bf16.mxu0 0
    %454 = vmatpush1.bf16.msra.mxu0 0
    %455 = vmatprep.subr.bf16.mxu0 0
    %456 = vmatpush1.bf16.msra.mxu0 0
    %457 = vmatprep.subr.bf16.mxu0 0
    %458 = vmatpush1.bf16.msra.mxu0 0
    %459 = vmatprep.subr.bf16.mxu0 0
    %460 = vmatpush1.bf16.msra.mxu0 0
    %461 = vmatprep.subr.bf16.mxu0 0
    %462 = vmatpush1.bf16.msra.mxu0 0
    %463 = vmatprep.subr.bf16.mxu0 0
    %464 = vmatpush1.bf16.msra.mxu0 0
    %465 = vmatprep.subr.bf16.mxu0 0
    %466 = vmatpush1.bf16.msra.mxu0 0
    %467 = vmatprep.subr.bf16.mxu0 0
    %468 = vmatpush1.bf16.msra.mxu0 0
    %469 = vmatprep.subr.bf16.mxu0 0
    %470 = vmatpush1.bf16.msra.mxu0 0
    %471 = vmatprep.subr.bf16.mxu0 0
    %472 = vmatpush1.bf16.msra.mxu0 0
    %473 = vmatprep.mubr.bf16.mxu0 0
    %474 = vmatmul.mubr.bf16.gmra.mrb[0].mxu0 %v390
    %v475 = vpop.f32.mrb[0].mxu0
    %v476 = vadd.f32 %v131, %v475
    %v477 = vpop.f32.mrb[0].mxu0
    %v478 = vadd.f32 %v135, %v477
    %v479 = vpop.f32.mrb[0].mxu0
    %v480 = vadd.f32 %v131, %v479
    %v481 = vpop.f32.mrb[0].mxu0
    %v482 = vadd.f32 %v135, %v481
    %483 = vmatprep.mubr.bf16.mxu0 0
    %484 = vmatmul.mubr.bf16.gmra.mrb[0].mxu0 %v393
    %v485 = vpop.f32.mrb[0].mxu0
    %v486 = vadd.f32 %v131, %v485
    %v487 = vpop.f32.mrb[0].mxu0
    %v488 = vadd.f32 %v135, %v487
    %v489 = vpop.f32.mrb[0].mxu0
    %v490 = vadd.f32 %v131, %v489
    %v491 = vpop.f32.mrb[0].mxu0
    %v492 = vadd.f32 %v135, %v491
    %493 = vmatprep.mubr.bf16.mxu0 0
    %494 = vmatmul.mubr.bf16.gmra.mrb[0].mxu0 %v396
    %v495 = vpop.f32.mrb[0].mxu0
    %v496 = vadd.f32 %v131, %v495
    %v497 = vpop.f32.mrb[0].mxu0
    %v498 = vadd.f32 %v135, %v497
    %v499 = vpop.f32.mrb[0].mxu0
    %v500 = vadd.f32 %v131, %v499
    %v501 = vpop.f32.mrb[0].mxu0
    %v502 = vadd.f32 %v135, %v501
    %503 = vmatprep.mubr.bf16.mxu0 0
    %504 = vmatmul.mubr.bf16.gmra.mrb[0].mxu0 %v399
    %v505 = vpop.f32.mrb[0].mxu0
    %v506 = vadd.f32 %v131, %v505
    %v507 = vpop.f32.mrb[0].mxu0
    %v508 = vadd.f32 %v135, %v507
    %v509 = vpop.f32.mrb[0].mxu0
    %v510 = vadd.f32 %v131, %v509
    %v511 = vpop.f32.mrb[0].mxu0
    %v512 = vadd.f32 %v135, %v511
    %513 = vmatprep.mubr.bf16.mxu0 0
    %514 = vmatmul.mubr.bf16.gmra.mrb[0].mxu0 %v402
    %v515 = vpop.f32.mrb[0].mxu0
    %v516 = vadd.f32 %v131, %v515
    %v517 = vpop.f32.mrb[0].mxu0
    %v518 = vadd.f32 %v135, %v517
    %v519 = vpop.f32.mrb[0].mxu0
    %v520 = vadd.f32 %v131, %v519
    %v521 = vpop.f32.mrb[0].mxu0
    %v522 = vadd.f32 %v135, %v521
    %523 = vmatprep.mubr.bf16.mxu0 0
    %524 = vmatmul.mubr.bf16.gmra.mrb[0].mxu0 %v405
    %v525 = vpop.f32.mrb[0].mxu0
    %v526 = vadd.f32 %v131, %v525
    %v527 = vpop.f32.mrb[0].mxu0
    %v528 = vadd.f32 %v135, %v527
    %v529 = vpop.f32.mrb[0].mxu0
    %v530 = vadd.f32 %v131, %v529
    %v531 = vpop.f32.mrb[0].mxu0
    %v532 = vadd.f32 %v135, %v531
    %533 = vmatprep.mubr.bf16.mxu0 0
    %534 = vmatmul.mubr.bf16.gmra.mrb[0].mxu0 %v408
    %v535 = vpop.f32.mrb[0].mxu0
    %v536 = vadd.f32 %v131, %v535
    %v537 = vpop.f32.mrb[0].mxu0
    %v538 = vadd.f32 %v135, %v537
    %v539 = vpop.f32.mrb[0].mxu0
    %v540 = vadd.f32 %v131, %v539
    %v541 = vpop.f32.mrb[0].mxu0
    %v542 = vadd.f32 %v135, %v541
    %543 = vmatprep.mubr.bf16.mxu0 0
    %544 = vmatmul.mubr.bf16.gmra.mrb[0].mxu0 %v411
    %v545 = vpop.f32.mrb[0].mxu0
    %v546 = vadd.f32 %v131, %v545
    %v547 = vpop.f32.mrb[0].mxu0
    %v548 = vadd.f32 %v135, %v547
    %v549 = vpop.f32.mrb[0].mxu0
    %v550 = vadd.f32 %v131, %v549
    %v551 = vpop.f32.mrb[0].mxu0
    %v552 = vadd.f32 %v135, %v551
    %553 = vmatprep.mubr.bf16.mxu0 0
    %554 = vmatmul.mubr.bf16.gmra.mrb[0].mxu0 %v414
    %v555 = vpop.f32.mrb[0].mxu0
    %v556 = vadd.f32 %v131, %v555
    %v557 = vpop.f32.mrb[0].mxu0
    %v558 = vadd.f32 %v135, %v557
    %v559 = vpop.f32.mrb[0].mxu0
    %v560 = vadd.f32 %v131, %v559
    %v561 = vpop.f32.mrb[0].mxu0
    %v562 = vadd.f32 %v135, %v561
    %563 = vdwg.mxu0
    %564 = vmatprep.subr.bf16.mxu0 %v303
    %565 = vmatpush1.bf16.msra.mxu0 %v302
    %566 = vmatprep.subr.bf16.mxu0 %v311
    %567 = vmatpush1.bf16.msra.mxu0 %v310
    %568 = vmatprep.subr.bf16.mxu0 %v319
    %569 = vmatpush1.bf16.msra.mxu0 %v318
    %570 = vmatprep.subr.bf16.mxu0 %v327
    %571 = vmatpush1.bf16.msra.mxu0 %v326
    %572 = vmatprep.subr.bf16.mxu0 %v335
    %573 = vmatpush1.bf16.msra.mxu0 %v334
    %574 = vmatprep.subr.bf16.mxu0 %v427
    %575 = vmatpush1.bf16.msra.mxu0 %v424
    %576 = vmatprep.subr.bf16.mxu0 0
    %577 = vmatpush1.bf16.msra.mxu0 0
    %578 = vmatprep.subr.bf16.mxu0 0
    %579 = vmatpush1.bf16.msra.mxu0 0
    %580 = vmatprep.subr.bf16.mxu0 0
    %581 = vmatpush1.bf16.msra.mxu0 0
    %582 = vmatprep.subr.bf16.mxu0 0
    %583 = vmatpush1.bf16.msra.mxu0 0
    %584 = vmatprep.subr.bf16.mxu0 0
    %585 = vmatpush1.bf16.msra.mxu0 0
    %586 = vmatprep.subr.bf16.mxu0 0
    %587 = vmatpush1.bf16.msra.mxu0 0
    %588 = vmatprep.subr.bf16.mxu0 0
    %589 = vmatpush1.bf16.msra.mxu0 0
    %590 = vmatprep.subr.bf16.mxu0 0
    %591 = vmatpush1.bf16.msra.mxu0 0
    %592 = vmatprep.subr.bf16.mxu0 0
    %593 = vmatpush1.bf16.msra.mxu0 0
    %594 = vmatprep.subr.bf16.mxu0 0
    %595 = vmatpush1.bf16.msra.mxu0 0
    %596 = vmatprep.mubr.bf16.mxu0 0
    %597 = vmatmul.mubr.bf16.gmra.mrb[0].mxu0 %v390
    %v598 = vpop.f32.mrb[0].mxu0
    %v599 = vadd.f32 %v139, %v598
    %v600 = vpop.f32.mrb[0].mxu0
    %v601 = vadd.f32 %v143, %v600
    %v602 = vpop.f32.mrb[0].mxu0
    %v603 = vadd.f32 %v139, %v602
    %v604 = vpop.f32.mrb[0].mxu0
    %v605 = vadd.f32 %v143, %v604
    %606 = vmatprep.mubr.bf16.mxu0 0
    %607 = vmatmul.mubr.bf16.gmra.mrb[0].mxu0 %v393
    %v608 = vpop.f32.mrb[0].mxu0
    %v609 = vadd.f32 %v139, %v608
    %v610 = vpop.f32.mrb[0].mxu0
    %v611 = vadd.f32 %v143, %v610
    %v612 = vpop.f32.mrb[0].mxu0
    %v613 = vadd.f32 %v139, %v612
    %v614 = vpop.f32.mrb[0].mxu0
    %v615 = vadd.f32 %v143, %v614
    %616 = vmatprep.mubr.bf16.mxu0 0
    %617 = vmatmul.mubr.bf16.gmra.mrb[0].mxu0 %v396
    %v618 = vpop.f32.mrb[0].mxu0
    %v619 = vadd.f32 %v139, %v618
    %v620 = vpop.f32.mrb[0].mxu0
    %v621 = vadd.f32 %v143, %v620
    %v622 = vpop.f32.mrb[0].mxu0
    %v623 = vadd.f32 %v139, %v622
    %v624 = vpop.f32.mrb[0].mxu0
    %v625 = vadd.f32 %v143, %v624
    %626 = vmatprep.mubr.bf16.mxu0 0
    %627 = vmatmul.mubr.bf16.gmra.mrb[0].mxu0 %v399
    %v628 = vpop.f32.mrb[0].mxu0
    %v629 = vadd.f32 %v139, %v628
    %v630 = vpop.f32.mrb[0].mxu0
    %v631 = vadd.f32 %v143, %v630
    %v632 = vpop.f32.mrb[0].mxu0
    %v633 = vadd.f32 %v139, %v632
    %v634 = vpop.f32.mrb[0].mxu0
    %v635 = vadd.f32 %v143, %v634
    %636 = vmatprep.mubr.bf16.mxu0 0
    %637 = vmatmul.mubr.bf16.gmra.mrb[0].mxu0 %v402
    %v638 = vpop.f32.mrb[0].mxu0
    %v639 = vadd.f32 %v139, %v638
    %v640 = vpop.f32.mrb[0].mxu0
    %v641 = vadd.f32 %v143, %v640
    %v642 = vpop.f32.mrb[0].mxu0
    %v643 = vadd.f32 %v139, %v642
    %v644 = vpop.f32.mrb[0].mxu0
    %v645 = vadd.f32 %v143, %v644
    %646 = vmatprep.mubr.bf16.mxu0 0
    %647 = vmatmul.mubr.bf16.gmra.mrb[0].mxu0 %v405
    %v648 = vpop.f32.mrb[0].mxu0
    %v649 = vadd.f32 %v139, %v648
    %v650 = vpop.f32.mrb[0].mxu0
    %v651 = vadd.f32 %v143, %v650
    %v652 = vpop.f32.mrb[0].mxu0
    %v653 = vadd.f32 %v139, %v652
    %v654 = vpop.f32.mrb[0].mxu0
    %v655 = vadd.f32 %v143, %v654
    %656 = vmatprep.mubr.bf16.mxu0 0
    %657 = vmatmul.mubr.bf16.gmra.mrb[0].mxu0 %v408
    %v658 = vpop.f32.mrb[0].mxu0
    %v659 = vadd.f32 %v139, %v658
    %v660 = vpop.f32.mrb[0].mxu0
    %v661 = vadd.f32 %v143, %v660
    %v662 = vpop.f32.mrb[0].mxu0
    %v663 = vadd.f32 %v139, %v662
    %v664 = vpop.f32.mrb[0].mxu0
    %v665 = vadd.f32 %v143, %v664
    %666 = vmatprep.mubr.bf16.mxu0 0
    %667 = vmatmul.mubr.bf16.gmra.mrb[0].mxu0 %v411
    %v668 = vpop.f32.mrb[0].mxu0
    %v669 = vadd.f32 %v139, %v668
    %v670 = vpop.f32.mrb[0].mxu0
    %v671 = vadd.f32 %v143, %v670
    %v672 = vpop.f32.mrb[0].mxu0
    %v673 = vadd.f32 %v139, %v672
    %v674 = vpop.f32.mrb[0].mxu0
    %v675 = vadd.f32 %v143, %v674
    %676 = vmatprep.mubr.bf16.mxu0 0
    %677 = vmatmul.mubr.bf16.gmra.mrb[0].mxu0 %v414
    %v678 = vpop.f32.mrb[0].mxu0
    %v679 = vadd.f32 %v139, %v678
    %v680 = vpop.f32.mrb[0].mxu0
    %v681 = vadd.f32 %v143, %v680
    %v682 = vpop.f32.mrb[0].mxu0
    %v683 = vadd.f32 %v139, %v682
    %v684 = vpop.f32.mrb[0].mxu0
    %v685 = vadd.f32 %v143, %v684
    %686 = vdwg.mxu0
    %687 = vmatprep.subr.bf16.mxu0 %v305
    %688 = vmatpush1.bf16.msra.mxu0 %v304
    %689 = vmatprep.subr.bf16.mxu0 %v313
    %690 = vmatpush1.bf16.msra.mxu0 %v312
    %691 = vmatprep.subr.bf16.mxu0 %v321
    %692 = vmatpush1.bf16.msra.mxu0 %v320
    %693 = vmatprep.subr.bf16.mxu0 %v329
    %694 = vmatpush1.bf16.msra.mxu0 %v328
    %695 = vmatprep.subr.bf16.mxu0 %v337
    %696 = vmatpush1.bf16.msra.mxu0 %v336
    %697 = vmatprep.subr.bf16.mxu0 %v433
    %698 = vmatpush1.bf16.msra.mxu0 %v430
    %699 = vmatprep.subr.bf16.mxu0 0
    %700 = vmatpush1.bf16.msra.mxu0 0
    %701 = vmatprep.subr.bf16.mxu0 0
    %702 = vmatpush1.bf16.msra.mxu0 0
    %703 = vmatprep.subr.bf16.mxu0 0
    %704 = vmatpush1.bf16.msra.mxu0 0
    %705 = vmatprep.subr.bf16.mxu0 0
    %706 = vmatpush1.bf16.msra.mxu0 0
    %707 = vmatprep.subr.bf16.mxu0 0
    %708 = vmatpush1.bf16.msra.mxu0 0
    %709 = vmatprep.subr.bf16.mxu0 0
    %710 = vmatpush1.bf16.msra.mxu0 0
    %711 = vmatprep.subr.bf16.mxu0 0
    %712 = vmatpush1.bf16.msra.mxu0 0
    %713 = vmatprep.subr.bf16.mxu0 0
    %714 = vmatpush1.bf16.msra.mxu0 0
    %715 = vmatprep.subr.bf16.mxu0 0
    %716 = vmatpush1.bf16.msra.mxu0 0
    %717 = vmatprep.subr.bf16.mxu0 0
    %718 = vmatpush1.bf16.msra.mxu0 0
    %719 = vmatprep.mubr.bf16.mxu0 0
    %720 = vmatmul.mubr.bf16.gmra.mrb[0].mxu0 %v390
    %v721 = vpop.f32.mrb[0].mxu0
    %v722 = vadd.f32 %v147, %v721
    %v723 = vpop.f32.mrb[0].mxu0
    %v724 = vadd.f32 %v151, %v723
    %v725 = vpop.f32.mrb[0].mxu0
    %v726 = vadd.f32 %v147, %v725
    %v727 = vpop.f32.mrb[0].mxu0
    %v728 = vadd.f32 %v151, %v727
    %729 = vmatprep.mubr.bf16.mxu0 0
    %730 = vmatmul.mubr.bf16.gmra.mrb[0].mxu0 %v393
    %v731 = vpop.f32.mrb[0].mxu0
    %v732 = vadd.f32 %v147, %v731
    %v733 = vpop.f32.mrb[0].mxu0
    %v734 = vadd.f32 %v151, %v733
    %v735 = vpop.f32.mrb[0].mxu0
    %v736 = vadd.f32 %v147, %v735
    %v737 = vpop.f32.mrb[0].mxu0
    %v738 = vadd.f32 %v151, %v737
    %739 = vmatprep.mubr.bf16.mxu0 0
    %740 = vmatmul.mubr.bf16.gmra.mrb[0].mxu0 %v396
    %v741 = vpop.f32.mrb[0].mxu0
    %v742 = vadd.f32 %v147, %v741
    %v743 = vpop.f32.mrb[0].mxu0
    %v744 = vadd.f32 %v151, %v743
    %v745 = vpop.f32.mrb[0].mxu0
    %v746 = vadd.f32 %v147, %v745
    %v747 = vpop.f32.mrb[0].mxu0
    %v748 = vadd.f32 %v151, %v747
    %749 = vmatprep.mubr.bf16.mxu0 0
    %750 = vmatmul.mubr.bf16.gmra.mrb[0].mxu0 %v399
    %v751 = vpop.f32.mrb[0].mxu0
    %v752 = vadd.f32 %v147, %v751
    %v753 = vpop.f32.mrb[0].mxu0
    %v754 = vadd.f32 %v151, %v753
    %v755 = vpop.f32.mrb[0].mxu0
    %v756 = vadd.f32 %v147, %v755
    %v757 = vpop.f32.mrb[0].mxu0
    %v758 = vadd.f32 %v151, %v757
    %759 = vmatprep.mubr.bf16.mxu0 0
    %760 = vmatmul.mubr.bf16.gmra.mrb[0].mxu0 %v402
    %v761 = vpop.f32.mrb[0].mxu0
    %v762 = vadd.f32 %v147, %v761
    %v763 = vpop.f32.mrb[0].mxu0
    %v764 = vadd.f32 %v151, %v763
    %v765 = vpop.f32.mrb[0].mxu0
    %v766 = vadd.f32 %v147, %v765
    %v767 = vpop.f32.mrb[0].mxu0
    %v768 = vadd.f32 %v151, %v767
    %769 = vmatprep.mubr.bf16.mxu0 0
    %770 = vmatmul.mubr.bf16.gmra.mrb[0].mxu0 %v405
    %v771 = vpop.f32.mrb[0].mxu0
    %v772 = vadd.f32 %v147, %v771
    %v773 = vpop.f32.mrb[0].mxu0
    %v774 = vadd.f32 %v151, %v773
    %v775 = vpop.f32.mrb[0].mxu0
    %v776 = vadd.f32 %v147, %v775
    %v777 = vpop.f32.mrb[0].mxu0
    %v778 = vadd.f32 %v151, %v777
    %779 = vmatprep.mubr.bf16.mxu0 0
    %780 = vmatmul.mubr.bf16.gmra.mrb[0].mxu0 %v408
    %v781 = vpop.f32.mrb[0].mxu0
    %v782 = vadd.f32 %v147, %v781
    %v783 = vpop.f32.mrb[0].mxu0
    %v784 = vadd.f32 %v151, %v783
    %v785 = vpop.f32.mrb[0].mxu0
    %v786 = vadd.f32 %v147, %v785
    %v787 = vpop.f32.mrb[0].mxu0
    %v788 = vadd.f32 %v151, %v787
    %789 = vmatprep.mubr.bf16.mxu0 0
    %790 = vmatmul.mubr.bf16.gmra.mrb[0].mxu0 %v411
    %v791 = vpop.f32.mrb[0].mxu0
    %v792 = vadd.f32 %v147, %v791
    %v793 = vpop.f32.mrb[0].mxu0
    %v794 = vadd.f32 %v151, %v793
    %v795 = vpop.f32.mrb[0].mxu0
    %v796 = vadd.f32 %v147, %v795
    %v797 = vpop.f32.mrb[0].mxu0
    %v798 = vadd.f32 %v151, %v797
    %799 = vmatprep.mubr.bf16.mxu0 0
    %800 = vmatmul.mubr.bf16.gmra.mrb[0].mxu0 %v414
    %v801 = vpop.f32.mrb[0].mxu0
    %v802 = vadd.f32 %v147, %v801
    %v803 = vpop.f32.mrb[0].mxu0
    %v804 = vadd.f32 %v151, %v803
    %v805 = vpop.f32.mrb[0].mxu0
    %v806 = vadd.f32 %v147, %v805
    %v807 = vpop.f32.mrb[0].mxu0
    %v808 = vadd.f32 %v151, %v807
    %809 = vdwg.mxu0
    %810 = vmatprep.subr.bf16.mxu0 %v307
    %811 = vmatpush1.bf16.msra.mxu0 %v306
    %812 = vmatprep.subr.bf16.mxu0 %v315
    %813 = vmatpush1.bf16.msra.mxu0 %v314
    %814 = vmatprep.subr.bf16.mxu0 %v323
    %815 = vmatpush1.bf16.msra.mxu0 %v322
    %816 = vmatprep.subr.bf16.mxu0 %v331
    %817 = vmatpush1.bf16.msra.mxu0 %v330
    %818 = vmatprep.subr.bf16.mxu0 %v339
    %819 = vmatpush1.bf16.msra.mxu0 %v338
    %820 = vmatprep.subr.bf16.mxu0 %v439
    %821 = vmatpush1.bf16.msra.mxu0 %v436
    %822 = vmatprep.subr.bf16.mxu0 0
    %823 = vmatpush1.bf16.msra.mxu0 0
    %824 = vmatprep.subr.bf16.mxu0 0
    %825 = vmatpush1.bf16.msra.mxu0 0
    %826 = vmatprep.subr.bf16.mxu0 0
    %827 = vmatpush1.bf16.msra.mxu0 0
    %828 = vmatprep.subr.bf16.mxu0 0
    %829 = vmatpush1.bf16.msra.mxu0 0
    %830 = vmatprep.subr.bf16.mxu0 0
    %831 = vmatpush1.bf16.msra.mxu0 0
    %832 = vmatprep.subr.bf16.mxu0 0
    %833 = vmatpush1.bf16.msra.mxu0 0
    %834 = vmatprep.subr.bf16.mxu0 0
    %835 = vmatpush1.bf16.msra.mxu0 0
    %836 = vmatprep.subr.bf16.mxu0 0
    %837 = vmatpush1.bf16.msra.mxu0 0
    %838 = vmatprep.subr.bf16.mxu0 0
    %839 = vmatpush1.bf16.msra.mxu0 0
    %840 = vmatprep.subr.bf16.mxu0 0
    %841 = vmatpush1.bf16.msra.mxu0 0
    %842 = vmatprep.mubr.bf16.mxu0 0
    %843 = vmatmul.mubr.bf16.gmra.mrb[0].mxu0 %v390
    %v844 = vpop.f32.mrb[0].mxu0
    %v845 = vadd.f32 %v155, %v844
    %v846 = vpop.f32.mrb[0].mxu0
    %v847 = vadd.f32 %v159, %v846
    %v848 = vpop.f32.mrb[0].mxu0
    %v849 = vadd.f32 %v155, %v848
    %v850 = vpop.f32.mrb[0].mxu0
    %v851 = vadd.f32 %v159, %v850
    %852 = vmatprep.mubr.bf16.mxu0 0
    %853 = vmatmul.mubr.bf16.gmra.mrb[0].mxu0 %v393
    %v854 = vpop.f32.mrb[0].mxu0
    %v855 = vadd.f32 %v155, %v854
    %v856 = vpop.f32.mrb[0].mxu0
    %v857 = vadd.f32 %v159, %v856
    %v858 = vpop.f32.mrb[0].mxu0
    %v859 = vadd.f32 %v155, %v858
    %v860 = vpop.f32.mrb[0].mxu0
    %v861 = vadd.f32 %v159, %v860
    %862 = vmatprep.mubr.bf16.mxu0 0
    %863 = vmatmul.mubr.bf16.gmra.mrb[0].mxu0 %v396
    %v864 = vpop.f32.mrb[0].mxu0
    %v865 = vadd.f32 %v155, %v864
    %v866 = vpop.f32.mrb[0].mxu0
    %v867 = vadd.f32 %v159, %v866
    %v868 = vpop.f32.mrb[0].mxu0
    %v869 = vadd.f32 %v155, %v868
    %v870 = vpop.f32.mrb[0].mxu0
    %v871 = vadd.f32 %v159, %v870
    %872 = vmatprep.mubr.bf16.mxu0 0
    %873 = vmatmul.mubr.bf16.gmra.mrb[0].mxu0 %v399
    %v874 = vpop.f32.mrb[0].mxu0
    %v875 = vadd.f32 %v155, %v874
    %v876 = vpop.f32.mrb[0].mxu0
    %v877 = vadd.f32 %v159, %v876
    %v878 = vpop.f32.mrb[0].mxu0
    %v879 = vadd.f32 %v155, %v878
    %v880 = vpop.f32.mrb[0].mxu0
    %v881 = vadd.f32 %v159, %v880
    %882 = vmatprep.mubr.bf16.mxu0 0
    %883 = vmatmul.mubr.bf16.gmra.mrb[0].mxu0 %v402
    %v884 = vpop.f32.mrb[0].mxu0
    %v885 = vadd.f32 %v155, %v884
    %v886 = vpop.f32.mrb[0].mxu0
    %v887 = vadd.f32 %v159, %v886
    %v888 = vpop.f32.mrb[0].mxu0
    %v889 = vadd.f32 %v155, %v888
    %v890 = vpop.f32.mrb[0].mxu0
    %v891 = vadd.f32 %v159, %v890
    %892 = vmatprep.mubr.bf16.mxu0 0
    %893 = vmatmul.mubr.bf16.gmra.mrb[0].mxu0 %v405
    %v894 = vpop.f32.mrb[0].mxu0
    %v895 = vadd.f32 %v155, %v894
    %v896 = vpop.f32.mrb[0].mxu0
    %v897 = vadd.f32 %v159, %v896
    %v898 = vpop.f32.mrb[0].mxu0
    %v899 = vadd.f32 %v155, %v898
    %v900 = vpop.f32.mrb[0].mxu0
    %v901 = vadd.f32 %v159, %v900
    %902 = vmatprep.mubr.bf16.mxu0 0
    %903 = vmatmul.mubr.bf16.gmra.mrb[0].mxu0 %v408
    %v904 = vpop.f32.mrb[0].mxu0
    %v905 = vadd.f32 %v155, %v904
    %v906 = vpop.f32.mrb[0].mxu0
    %v907 = vadd.f32 %v159, %v906
    %v908 = vpop.f32.mrb[0].mxu0
    %v909 = vadd.f32 %v155, %v908
    %v910 = vpop.f32.mrb[0].mxu0
    %v911 = vadd.f32 %v159, %v910
    %912 = vmatprep.mubr.bf16.mxu0 0
    %913 = vmatmul.mubr.bf16.gmra.mrb[0].mxu0 %v411
    %v914 = vpop.f32.mrb[0].mxu0
    %v915 = vadd.f32 %v155, %v914
    %v916 = vpop.f32.mrb[0].mxu0
    %v917 = vadd.f32 %v159, %v916
    %v918 = vpop.f32.mrb[0].mxu0
    %v919 = vadd.f32 %v155, %v918
    %v920 = vpop.f32.mrb[0].mxu0
    %v921 = vadd.f32 %v159, %v920
    %922 = vmatprep.mubr.bf16.mxu0 0
    %923 = vmatmul.mubr.bf16.gmra.mrb[0].mxu0 %v414
    %v924 = vpop.f32.mrb[0].mxu0
    %v925 = vadd.f32 %v155, %v924
    %v926 = vpop.f32.mrb[0].mxu0
    %v927 = vadd.f32 %v159, %v926
    %v928 = vpop.f32.mrb[0].mxu0
    %v929 = vadd.f32 %v155, %v928
    %v930 = vpop.f32.mrb[0].mxu0
    %v931 = vadd.f32 %v159, %v930
    %932 = vdwg.mxu0
    %v933 = vpack.c.bf16 %v480, %v476
    %v934 = vpack.c.bf16 %v482, %v478
    %v935 = vpack.c.bf16 %v603, %v599
    %v936 = vpack.c.bf16 %v605, %v601
    %v937 = vpack.c.bf16 %v726, %v722
    %v938 = vpack.c.bf16 %v728, %v724
    %v939 = vpack.c.bf16 %v849, %v845
    %v940 = vpack.c.bf16 %v851, %v847
    %v941 = vpack.c.bf16 %v490, %v486
    %v942 = vpack.c.bf16 %v492, %v488
    %v943 = vpack.c.bf16 %v613, %v609
    %v944 = vpack.c.bf16 %v615, %v611
    %v945 = vpack.c.bf16 %v736, %v732
    %v946 = vpack.c.bf16 %v738, %v734
    %v947 = vpack.c.bf16 %v859, %v855
    %v948 = vpack.c.bf16 %v861, %v857
    %v949 = vpack.c.bf16 %v500, %v496
    %v950 = vpack.c.bf16 %v502, %v498
    %v951 = vpack.c.bf16 %v623, %v619
    %v952 = vpack.c.bf16 %v625, %v621
    %v953 = vpack.c.bf16 %v746, %v742
    %v954 = vpack.c.bf16 %v748, %v744
    %v955 = vpack.c.bf16 %v869, %v865
    %v956 = vpack.c.bf16 %v871, %v867
    %v957 = vpack.c.bf16 %v510, %v506
    %v958 = vpack.c.bf16 %v512, %v508
    %v959 = vpack.c.bf16 %v633, %v629
    %v960 = vpack.c.bf16 %v635, %v631
    %v961 = vpack.c.bf16 %v756, %v752
    %v962 = vpack.c.bf16 %v758, %v754
    %v963 = vpack.c.bf16 %v879, %v875
    %v964 = vpack.c.bf16 %v881, %v877
    %v965 = vpack.c.bf16 %v520, %v516
    %v966 = vpack.c.bf16 %v522, %v518
    %v967 = vpack.c.bf16 %v643, %v639
    %v968 = vpack.c.bf16 %v645, %v641
    %v969 = vpack.c.bf16 %v766, %v762
    %v970 = vpack.c.bf16 %v768, %v764
    %v971 = vpack.c.bf16 %v889, %v885
    %v972 = vpack.c.bf16 %v891, %v887
    %v973 = vpack.c.bf16 %v530, %v526
    %v974 = vpack.c.bf16 %v532, %v528
    %v975 = vpack.c.bf16 %v653, %v649
    %v976 = vpack.c.bf16 %v655, %v651
    %v977 = vpack.c.bf16 %v776, %v772
    %v978 = vpack.c.bf16 %v778, %v774
    %v979 = vpack.c.bf16 %v899, %v895
    %v980 = vpack.c.bf16 %v901, %v897
    %v981 = vpack.c.bf16 %v540, %v536
    %v982 = vpack.c.bf16 %v542, %v538
    %v983 = vpack.c.bf16 %v663, %v659
    %v984 = vpack.c.bf16 %v665, %v661
    %v985 = vpack.c.bf16 %v786, %v782
    %v986 = vpack.c.bf16 %v788, %v784
    %v987 = vpack.c.bf16 %v909, %v905
    %v988 = vpack.c.bf16 %v911, %v907
    %v989 = vpack.c.bf16 %v550, %v546
    %v990 = vpack.c.bf16 %v552, %v548
    %v991 = vpack.c.bf16 %v673, %v669
    %v992 = vpack.c.bf16 %v675, %v671
    %v993 = vpack.c.bf16 %v796, %v792
    %v994 = vpack.c.bf16 %v798, %v794
    %v995 = vpack.c.bf16 %v919, %v915
    %v996 = vpack.c.bf16 %v921, %v917
    %v997 = vpack.c.bf16 %v560, %v556
    %v998 = vpack.c.bf16 %v562, %v558
    %v999 = vpack.c.bf16 %v683, %v679
    %v1000 = vpack.c.bf16 %v685, %v681
    %v1001 = vpack.c.bf16 %v806, %v802
    %v1002 = vpack.c.bf16 %v808, %v804
    %v1003 = vpack.c.bf16 %v929, %v925
    %v1004 = vpack.c.bf16 %v931, %v927
    %v1077 = vunpack.c.l.b16 %v933
    %v1078 = vunpack.c.l.b16 %v934
    %v1079 = vunpack.c.l.b16 %v935
    %v1080 = vunpack.c.l.b16 %v936
    %v1081 = vunpack.c.l.b16 %v937
    %v1082 = vunpack.c.l.b16 %v938
    %v1083 = vunpack.c.l.b16 %v939
    %v1084 = vunpack.c.l.b16 %v940
    %v1085 = vunpack.c.h.b16 %v933
    %v1086 = vunpack.c.h.b16 %v934
    %v1087 = vunpack.c.h.b16 %v935
    %v1088 = vunpack.c.h.b16 %v936
    %v1089 = vunpack.c.h.b16 %v937
    %v1090 = vunpack.c.h.b16 %v938
    %v1091 = vunpack.c.h.b16 %v939
    %v1092 = vunpack.c.h.b16 %v940
    %v1093 = vunpack.c.l.b16 %v941
    %v1094 = vunpack.c.l.b16 %v942
    %v1095 = vunpack.c.l.b16 %v943
    %v1096 = vunpack.c.l.b16 %v944
    %v1097 = vunpack.c.l.b16 %v945
    %v1098 = vunpack.c.l.b16 %v946
    %v1099 = vunpack.c.l.b16 %v947
    %v1100 = vunpack.c.l.b16 %v948
    %v1101 = vunpack.c.h.b16 %v941
    %v1102 = vunpack.c.h.b16 %v942
    %v1103 = vunpack.c.h.b16 %v943
    %v1104 = vunpack.c.h.b16 %v944
    %v1105 = vunpack.c.h.b16 %v945
    %v1106 = vunpack.c.h.b16 %v946
    %v1107 = vunpack.c.h.b16 %v947
    %v1108 = vunpack.c.h.b16 %v948
    %v1109 = vunpack.c.l.b16 %v949
    %v1110 = vunpack.c.l.b16 %v950
    %v1111 = vunpack.c.l.b16 %v951
    %v1112 = vunpack.c.l.b16 %v952
    %v1113 = vunpack.c.l.b16 %v953
    %v1114 = vunpack.c.l.b16 %v954
    %v1115 = vunpack.c.l.b16 %v955
    %v1116 = vunpack.c.l.b16 %v956
    %v1117 = vunpack.c.h.b16 %v949
    %v1118 = vunpack.c.h.b16 %v950
    %v1119 = vunpack.c.h.b16 %v951
    %v1120 = vunpack.c.h.b16 %v952
    %v1121 = vunpack.c.h.b16 %v953
    %v1122 = vunpack.c.h.b16 %v954
    %v1123 = vunpack.c.h.b16 %v955
    %v1124 = vunpack.c.h.b16 %v956
    %v1125 = vunpack.c.l.b16 %v957
    %v1126 = vunpack.c.l.b16 %v958
    %v1127 = vunpack.c.l.b16 %v959
    %v1128 = vunpack.c.l.b16 %v960
    %v1129 = vunpack.c.l.b16 %v961
    %v1130 = vunpack.c.l.b16 %v962
    %v1131 = vunpack.c.l.b16 %v963
    %v1132 = vunpack.c.l.b16 %v964
    %v1133 = vunpack.c.h.b16 %v957
    %v1134 = vunpack.c.h.b16 %v958
    %v1135 = vunpack.c.h.b16 %v959
    %v1136 = vunpack.c.h.b16 %v960
    %v1137 = vunpack.c.h.b16 %v961
    %v1138 = vunpack.c.h.b16 %v962
    %v1139 = vunpack.c.h.b16 %v963
    %v1140 = vunpack.c.h.b16 %v964
    %v1141 = vunpack.c.l.b16 %v965
    %v1142 = vunpack.c.l.b16 %v966
    %v1143 = vunpack.c.l.b16 %v967
    %v1144 = vunpack.c.l.b16 %v968
    %v1145 = vunpack.c.l.b16 %v969
    %v1146 = vunpack.c.l.b16 %v970
    %v1147 = vunpack.c.l.b16 %v971
    %v1148 = vunpack.c.l.b16 %v972
    %v1149 = vunpack.c.h.b16 %v965
    %v1150 = vunpack.c.h.b16 %v966
    %v1151 = vunpack.c.h.b16 %v967
    %v1152 = vunpack.c.h.b16 %v968
    %v1153 = vunpack.c.h.b16 %v969
    %v1154 = vunpack.c.h.b16 %v970
    %v1155 = vunpack.c.h.b16 %v971
    %v1156 = vunpack.c.h.b16 %v972
    %v1157 = vunpack.c.l.b16 %v973
    %v1158 = vunpack.c.l.b16 %v974
    %v1159 = vunpack.c.l.b16 %v975
    %v1160 = vunpack.c.l.b16 %v976
    %v1161 = vunpack.c.l.b16 %v977
    %v1162 = vunpack.c.l.b16 %v978
    %v1163 = vunpack.c.l.b16 %v979
    %v1164 = vunpack.c.l.b16 %v980
    %v1165 = vunpack.c.h.b16 %v973
    %v1166 = vunpack.c.h.b16 %v974
    %v1167 = vunpack.c.h.b16 %v975
    %v1168 = vunpack.c.h.b16 %v976
    %v1169 = vunpack.c.h.b16 %v977
    %v1170 = vunpack.c.h.b16 %v978
    %v1171 = vunpack.c.h.b16 %v979
    %v1172 = vunpack.c.h.b16 %v980
    %v1173 = vunpack.c.l.b16 %v981
    %v1174 = vunpack.c.l.b16 %v982
    %v1175 = vunpack.c.l.b16 %v983
    %v1176 = vunpack.c.l.b16 %v984
    %v1177 = vunpack.c.l.b16 %v985
    %v1178 = vunpack.c.l.b16 %v986
    %v1179 = vunpack.c.l.b16 %v987
    %v1180 = vunpack.c.l.b16 %v988
    %v1181 = vunpack.c.h.b16 %v981
    %v1182 = vunpack.c.h.b16 %v982
    %v1183 = vunpack.c.h.b16 %v983
    %v1184 = vunpack.c.h.b16 %v984
    %v1185 = vunpack.c.h.b16 %v985
    %v1186 = vunpack.c.h.b16 %v986
    %v1187 = vunpack.c.h.b16 %v987
    %v1188 = vunpack.c.h.b16 %v988
    %v1189 = vunpack.c.l.b16 %v989
    %v1190 = vunpack.c.l.b16 %v990
    %v1191 = vunpack.c.l.b16 %v991
    %v1192 = vunpack.c.l.b16 %v992
    %v1193 = vunpack.c.l.b16 %v993
    %v1194 = vunpack.c.l.b16 %v994
    %v1195 = vunpack.c.l.b16 %v995
    %v1196 = vunpack.c.l.b16 %v996
    %v1197 = vunpack.c.h.b16 %v989
    %v1198 = vunpack.c.h.b16 %v990
    %v1199 = vunpack.c.h.b16 %v991
    %v1200 = vunpack.c.h.b16 %v992
    %v1201 = vunpack.c.h.b16 %v993
    %v1202 = vunpack.c.h.b16 %v994
    %v1203 = vunpack.c.h.b16 %v995
    %v1204 = vunpack.c.h.b16 %v996
    %v1205 = vunpack.c.l.b16 %v997
    %v1206 = vunpack.c.l.b16 %v998
    %v1207 = vunpack.c.l.b16 %v999
    %v1208 = vunpack.c.l.b16 %v1000
    %v1209 = vunpack.c.l.b16 %v1001
    %v1210 = vunpack.c.l.b16 %v1002
    %v1211 = vunpack.c.l.b16 %v1003
    %v1212 = vunpack.c.l.b16 %v1004
    %v1213 = vunpack.c.h.b16 %v997
    %v1214 = vunpack.c.h.b16 %v998
    %v1215 = vunpack.c.h.b16 %v999
    %v1216 = vunpack.c.h.b16 %v1000
    %v1217 = vunpack.c.h.b16 %v1001
    %v1218 = vunpack.c.h.b16 %v1002
    %v1219 = vunpack.c.h.b16 %v1003
    %v1220 = vunpack.c.h.b16 %v1004
    %v1221 = vpack.c.b16 %v1078, %v1077
    %v1222 = vpack.c.b16 %v1080, %v1079
    %v1223 = vpack.c.b16 %v1082, %v1081
    %v1224 = vpack.c.b16 %v1084, %v1083
    %v1225 = vpack.c.b16 %v1086, %v1085
    %v1226 = vpack.c.b16 %v1088, %v1087
    %v1227 = vpack.c.b16 %v1090, %v1089
    %v1228 = vpack.c.b16 %v1092, %v1091
    %v1229 = vpack.c.b16 %v1094, %v1093
    %v1230 = vpack.c.b16 %v1096, %v1095
    %v1231 = vpack.c.b16 %v1098, %v1097
    %v1232 = vpack.c.b16 %v1100, %v1099
    %v1233 = vpack.c.b16 %v1102, %v1101
    %v1234 = vpack.c.b16 %v1104, %v1103
    %v1235 = vpack.c.b16 %v1106, %v1105
    %v1236 = vpack.c.b16 %v1108, %v1107
    %v1237 = vpack.c.b16 %v1110, %v1109
    %v1238 = vpack.c.b16 %v1112, %v1111
    %v1239 = vpack.c.b16 %v1114, %v1113
    %v1240 = vpack.c.b16 %v1116, %v1115
    %v1241 = vpack.c.b16 %v1118, %v1117
    %v1242 = vpack.c.b16 %v1120, %v1119
    %v1243 = vpack.c.b16 %v1122, %v1121
    %v1244 = vpack.c.b16 %v1124, %v1123
    %v1245 = vpack.c.b16 %v1126, %v1125
    %v1246 = vpack.c.b16 %v1128, %v1127
    %v1247 = vpack.c.b16 %v1130, %v1129
    %v1248 = vpack.c.b16 %v1132, %v1131
    %v1249 = vpack.c.b16 %v1134, %v1133
    %v1250 = vpack.c.b16 %v1136, %v1135
    %v1251 = vpack.c.b16 %v1138, %v1137
    %v1252 = vpack.c.b16 %v1140, %v1139
    %v1253 = vpack.c.b16 %v1142, %v1141
    %v1254 = vpack.c.b16 %v1144, %v1143
    %v1255 = vpack.c.b16 %v1146, %v1145
    %v1256 = vpack.c.b16 %v1148, %v1147
    %v1257 = vpack.c.b16 %v1150, %v1149
    %v1258 = vpack.c.b16 %v1152, %v1151
    %v1259 = vpack.c.b16 %v1154, %v1153
    %v1260 = vpack.c.b16 %v1156, %v1155
    %v1261 = vpack.c.b16 %v1158, %v1157
    %v1262 = vpack.c.b16 %v1160, %v1159
    %v1263 = vpack.c.b16 %v1162, %v1161
    %v1264 = vpack.c.b16 %v1164, %v1163
    %v1265 = vpack.c.b16 %v1166, %v1165
    %v1266 = vpack.c.b16 %v1168, %v1167
    %v1267 = vpack.c.b16 %v1170, %v1169
    %v1268 = vpack.c.b16 %v1172, %v1171
    %v1269 = vpack.c.b16 %v1174, %v1173
    %v1270 = vpack.c.b16 %v1176, %v1175
    %v1271 = vpack.c.b16 %v1178, %v1177
    %v1272 = vpack.c.b16 %v1180, %v1179
    %v1273 = vpack.c.b16 %v1182, %v1181
    %v1274 = vpack.c.b16 %v1184, %v1183
    %v1275 = vpack.c.b16 %v1186, %v1185
    %v1276 = vpack.c.b16 %v1188, %v1187
    %v1277 = vpack.c.b16 %v1190, %v1189
    %v1278 = vpack.c.b16 %v1192, %v1191
    %v1279 = vpack.c.b16 %v1194, %v1193
    %v1280 = vpack.c.b16 %v1196, %v1195
    %v1281 = vpack.c.b16 %v1198, %v1197
    %v1282 = vpack.c.b16 %v1200, %v1199
    %v1283 = vpack.c.b16 %v1202, %v1201
    %v1284 = vpack.c.b16 %v1204, %v1203
    %v1285 = vpack.c.b16 %v1206, %v1205
    %v1286 = vpack.c.b16 %v1208, %v1207
    %v1287 = vpack.c.b16 %v1210, %v1209
    %v1288 = vpack.c.b16 %v1212, %v1211
    %v1289 = vpack.c.b16 %v1214, %v1213
    %v1290 = vpack.c.b16 %v1216, %v1215
    %v1291 = vpack.c.b16 %v1218, %v1217
    %v1292 = vpack.c.b16 %v1220, %v1219
    %1365 = vst [vmem:[#allocation8] sm:$0xff] %v1221
    %1366 = vst [vmem:[#allocation8 + $0x8] sm:$0xff] %v1222
    %1367 = vst [vmem:[#allocation8 + $0x10] sm:$0xff] %v1223
    %1368 = vst [vmem:[#allocation8 + $0x18] sm:$0xff] %v1224
    %1369 = vst [vmem:[#allocation8 + $0x20] sm:$0xff] %v1225
    %1370 = vst [vmem:[#allocation8 + $0x28] sm:$0xff] %v1226
    %1371 = vst [vmem:[#allocation8 + $0x30] sm:$0xff] %v1227
    %1372 = vst [vmem:[#allocation8 + $0x38] sm:$0xff] %v1228
    %1373 = vst [vmem:[#allocation8 + $0x40] sm:$0xff] %v1229
    %1374 = vst [vmem:[#allocation8 + $0x48] sm:$0xff] %v1230
    %1375 = vst [vmem:[#allocation8 + $0x50] sm:$0xff] %v1231
    %1376 = vst [vmem:[#allocation8 + $0x58] sm:$0xff] %v1232
    %1377 = vst [vmem:[#allocation8 + $0x60] sm:$0xff] %v1233
    %1378 = vst [vmem:[#allocation8 + $0x68] sm:$0xff] %v1234
    %1379 = vst [vmem:[#allocation8 + $0x70] sm:$0xff] %v1235
    %1380 = vst [vmem:[#allocation8 + $0x78] sm:$0xff] %v1236
    %1381 = vst [vmem:[#allocation8 + $0x80] sm:$0xff] %v1237
    %1382 = vst [vmem:[#allocation8 + $0x88] sm:$0xff] %v1238
    %1383 = vst [vmem:[#allocation8 + $0x90] sm:$0xff] %v1239
    %1384 = vst [vmem:[#allocation8 + $0x98] sm:$0xff] %v1240
    %1385 = vst [vmem:[#allocation8 + $0xa0] sm:$0xff] %v1241
    %1386 = vst [vmem:[#allocation8 + $0xa8] sm:$0xff] %v1242
    %1387 = vst [vmem:[#allocation8 + $0xb0] sm:$0xff] %v1243
    %1388 = vst [vmem:[#allocation8 + $0xb8] sm:$0xff] %v1244
    %1389 = vst [vmem:[#allocation8 + $0xc0] sm:$0xff] %v1245
    %1390 = vst [vmem:[#allocation8 + $0xc8] sm:$0xff] %v1246
    %1391 = vst [vmem:[#allocation8 + $0xd0] sm:$0xff] %v1247
    %1392 = vst [vmem:[#allocation8 + $0xd8] sm:$0xff] %v1248
    %1393 = vst [vmem:[#allocation8 + $0xe0] sm:$0xff] %v1249
    %1394 = vst [vmem:[#allocation8 + $0xe8] sm:$0xff] %v1250
    %1395 = vst [vmem:[#allocation8 + $0xf0] sm:$0xff] %v1251
    %1396 = vst [vmem:[#allocation8 + $0xf8] sm:$0xff] %v1252
    %1397 = vst [vmem:[#allocation8 + $0x100] sm:$0xff] %v1253
    %1398 = vst [vmem:[#allocation8 + $0x108] sm:$0xff] %v1254
    %1399 = vst [vmem:[#allocation8 + $0x110] sm:$0xff] %v1255
    %1400 = vst [vmem:[#allocation8 + $0x118] sm:$0xff] %v1256
    %1401 = vst [vmem:[#allocation8 + $0x120] sm:$0xff] %v1257
    %1402 = vst [vmem:[#allocation8 + $0x128] sm:$0xff] %v1258
    %1403 = vst [vmem:[#allocation8 + $0x130] sm:$0xff] %v1259
    %1404 = vst [vmem:[#allocation8 + $0x138] sm:$0xff] %v1260
    %1405 = vst [vmem:[#allocation8 + $0x140] sm:$0xff] %v1261
    %1406 = vst [vmem:[#allocation8 + $0x148] sm:$0xff] %v1262
    %1407 = vst [vmem:[#allocation8 + $0x150] sm:$0xff] %v1263
    %1408 = vst [vmem:[#allocation8 + $0x158] sm:$0xff] %v1264
    %1409 = vst [vmem:[#allocation8 + $0x160] sm:$0xff] %v1265
    %1410 = vst [vmem:[#allocation8 + $0x168] sm:$0xff] %v1266
    %1411 = vst [vmem:[#allocation8 + $0x170] sm:$0xff] %v1267
    %1412 = vst [vmem:[#allocation8 + $0x178] sm:$0xff] %v1268
    %1413 = vst [vmem:[#allocation8 + $0x180] sm:$0xff] %v1269
    %1414 = vst [vmem:[#allocation8 + $0x188] sm:$0xff] %v1270
    %1415 = vst [vmem:[#allocation8 + $0x190] sm:$0xff] %v1271
    %1416 = vst [vmem:[#allocation8 + $0x198] sm:$0xff] %v1272
    %1417 = vst [vmem:[#allocation8 + $0x1a0] sm:$0xff] %v1273
    %1418 = vst [vmem:[#allocation8 + $0x1a8] sm:$0xff] %v1274
    %1419 = vst [vmem:[#allocation8 + $0x1b0] sm:$0xff] %v1275
    %1420 = vst [vmem:[#allocation8 + $0x1b8] sm:$0xff] %v1276
    %1421 = vst [vmem:[#allocation8 + $0x1c0] sm:$0xff] %v1277
    %1422 = vst [vmem:[#allocation8 + $0x1c8] sm:$0xff] %v1278
    %1423 = vst [vmem:[#allocation8 + $0x1d0] sm:$0xff] %v1279
    %1424 = vst [vmem:[#allocation8 + $0x1d8] sm:$0xff] %v1280
    %1425 = vst [vmem:[#allocation8 + $0x1e0] sm:$0xff] %v1281
    %1426 = vst [vmem:[#allocation8 + $0x1e8] sm:$0xff] %v1282
    %1427 = vst [vmem:[#allocation8 + $0x1f0] sm:$0xff] %v1283
    %1428 = vst [vmem:[#allocation8 + $0x1f8] sm:$0xff] %v1284
    %1429 = vst [vmem:[#allocation8 + $0x200] sm:$0xff] %v1285
    %1430 = vst [vmem:[#allocation8 + $0x208] sm:$0xff] %v1286
    %1431 = vst [vmem:[#allocation8 + $0x210] sm:$0xff] %v1287
    %1432 = vst [vmem:[#allocation8 + $0x218] sm:$0xff] %v1288
    %1433 = vst [vmem:[#allocation8 + $0x220] sm:$0xff] %v1289
    %1434 = vst [vmem:[#allocation8 + $0x228] sm:$0xff] %v1290
    %1435 = vst [vmem:[#allocation8 + $0x230] sm:$0xff] %v1291
    %1436 = vst [vmem:[#allocation8 + $0x238] sm:$0xff] %v1292
    // Predicated region
    $region26: #{tpu_custom_call.1} parent=1 // pred_check
      _
    $region27: #{tpu_custom_call.1} parent=1 // pred_check_branch
      %1438 = sbr.rel (0) target = $region29
    $region28: #{tpu_custom_call.1} parent=1 // pred_region
      %s1440 = ssub.s32 9216, 9216
      %1441 = vsyncadd [#allocation4], %s1440
      %s1442 = sshll.u32 [#allocation8], 4
      %s1443 = int_to_ptr.vmem [resolvable:$true] %s1442
      %1448 = dma.vmem_to_hbm [thread:$0]  %s1443, 9216, %s3, [#allocation4], 512, 512, 32
    $region29: #{tpu_custom_call.1} parent=1 // pred_fallthru
      _
    // Predicated region
    $region30: #{tpu_custom_call.1} parent=1 // pred_check
      _
    $region31: #{tpu_custom_call.1} parent=1 // pred_check_branch
      %1450 = sbr.rel (0) target = $region33
    $region32: #{tpu_custom_call.1} parent=1 // pred_region
      %1451 = dma.done [#allocation4], 9216
    $region33: #{tpu_custom_call.1} parent=1 // pred_fallthru
      _
    %1452 = vsyncpa [#allocation3], 1
    %1453 = vsyncpa [#allocation6], 1
    %1454 = vsyncpa [#allocation4], 1

// kernel: tpu_custom_call.1
$region0: #{tpu_custom_call.1}
  #allocation0 [shape = 'u32[]', space=smem, size = 0x4, offset = 0x4, fixed_abs, tag = 'smem constant byte address 0x4 - core index']
  #allocation1 [shape = 'u32[144,128]{1,0:T(1,128)}', space=vmem, size = 0x12000, scoped, tag = 'internal scratch']
  %s0 = inlined_call_operand.hbm [shape: f32[144,84], index: 0, kind: input, shape index: {}]
  %s1 = inlined_call_operand.hbm [shape: bf16[84,1024], index: 1, kind: input, shape index: {}]
  %s2 = inlined_call_operand.hbm [shape: f32[1,1024], index: 2, kind: input, shape index: {}]
  %s3 = inlined_call_operand.hbm [shape: bf16[144,1024], index: 3, kind: output, shape index: {}]
  %s4 = sld [smem:[#allocation0]]
  $region34: #{tpu_custom_call.1} parent=0
    _
  %s6 = ssub.s32 1, %s4
  %s7 = scalar_select 0, %s6, %s4
  $region1: #{tpu_custom_call.1} parent=0
    #allocation2 [shape = 'u8[73728]{0}', space=vmem, size = 0x12000, scoped, tag = 'input window, operand 0, single buffered']
    #allocation3 [shape = 's32[1]{0}', space=sflag, size = 0x4, scoped, tag = 'scoped memory for tpu_custom_call.1']
    #allocation4 [shape = 's32[1]{0}', space=sflag, size = 0x4, scoped, tag = 'scoped memory for tpu_custom_call.1']
    #allocation5 [shape = 'u8[180224]{0}', space=vmem, size = 0x2c000, scoped, tag = 'input window, operand 1, single buffered']
    #allocation6 [shape = 's32[1]{0}', space=sflag, size = 0x4, scoped, tag = 'scoped memory for tpu_custom_call.1']
    #allocation7 [shape = 'u8[4096]{0}', space=vmem, size = 0x1000, scoped, tag = 'input window, operand 2, single buffered']
    #allocation8 [shape = 'u8[294912]{0}', space=vmem, size = 0x48000, scoped, tag = 'output window, operand 0, single buffered']
    %8 = vsyncpa [#allocation3], 0
    %9 = vsyncpa [#allocation6], 0
    %10 = vsyncpa [#allocation4], 0
    // Predicated region
    $region2: #{tpu_custom_call.1} parent=1 // pred_check
      _
    $region3: #{tpu_custom_call.1} parent=1 // pred_check_branch
      %12 = sbr.rel (0) target = $region5
    $region4: #{tpu_custom_call.1} parent=1 // pred_region
      %s14 = ssub.s32 2304, 2304
      %15 = vsyncadd [#allocation3], %s14
      %s16 = sshll.u32 [#allocation2], 4
      %s17 = int_to_ptr.vmem [resolvable:$true] %s16
      %22 = dma.hbm_to_vmem [thread:$0]  %s0, 2304, %s17, [#allocation3], 128, 128, 8
    $region5: #{tpu_custom_call.1} parent=1 // pred_fallthru
      _
    // Predicated region
    $region6: #{tpu_custom_call.1} parent=1 // pred_check
      _
    $region7: #{tpu_custom_call.1} parent=1 // pred_check_branch
      %24 = sbr.rel (0) target = $region9
    $region8: #{tpu_custom_call.1} parent=1 // pred_region
      %s26 = ssub.s32 5632, 5632
      %27 = vsyncadd [#allocation6], %s26
      %s28 = sshll.u32 [#allocation5], 4
      %s29 = int_to_ptr.vmem [resolvable:$true] %s28
      %34 = dma.hbm_to_vmem [thread:$0]  %s1, 5632, %s29, [#allocation6], 512, 512, 32
    $region9: #{tpu_custom_call.1} parent=1 // pred_fallthru
      _
    // Predicated region
    $region10: #{tpu_custom_call.1} parent=1 // pred_check
      _
    $region11: #{tpu_custom_call.1} parent=1 // pred_check_branch
      %36 = sbr.rel (0) target = $region13
    $region12: #{tpu_custom_call.1} parent=1 // pred_region
      %s38 = ssub.s32 128, 128
      %39 = vsyncadd [#allocation6], %s38
      %s41 = sshll.u32 [#allocation7], 4
      %s42 = int_to_ptr.vmem [resolvable:$true] %s41
      %44 = dma.hbm_to_vmem [thread:$0]  %s2, 128, %s42, [#allocation6]
    $region13: #{tpu_custom_call.1} parent=1 // pred_fallthru
      _
    // Predicated region
    $region14: #{tpu_custom_call.1} parent=1 // pred_check
      _
    $region15: #{tpu_custom_call.1} parent=1 // pred_check_branch
      %46 = sbr.rel (0) target = $region17
    $region16: #{tpu_custom_call.1} parent=1 // pred_region
      %47 = dma.done [#allocation3], 2304
    $region17: #{tpu_custom_call.1} parent=1 // pred_fallthru
      _
    // Predicated region
    $region18: #{tpu_custom_call.1} parent=1 // pred_check
      _
    $region19: #{tpu_custom_call.1} parent=1 // pred_check_branch
      %49 = sbr.rel (0) target = $region21
    $region20: #{tpu_custom_call.1} parent=1 // pred_region
      %50 = dma.done [#allocation6], 5632
    $region21: #{tpu_custom_call.1} parent=1 // pred_fallthru
      _
    // Predicated region
    $region22: #{tpu_custom_call.1} parent=1 // pred_check
      _
    $region23: #{tpu_custom_call.1} parent=1 // pred_check_branch
      %52 = sbr.rel (0) target = $region25
    $region24: #{tpu_custom_call.1} parent=1 // pred_region
      %53 = dma.done [#allocation6], 128
    $region25: #{tpu_custom_call.1} parent=1 // pred_fallthru
      _
    %v55 = vld [vmem:[#allocation2] sm:$0xff]
    %v56 = vld [vmem:[#allocation2 + $0x8] sm:$0xff]
    %v57 = vld [vmem:[#allocation2 + $0x10] sm:$0xff]
    %v58 = vld [vmem:[#allocation2 + $0x18] sm:$0xff]
    %v59 = vld [vmem:[#allocation2 + $0x20] sm:$0xff]
    %v60 = vld [vmem:[#allocation2 + $0x28] sm:$0xff]
    %v61 = vld [vmem:[#allocation2 + $0x30] sm:$0xff]
    %v62 = vld [vmem:[#allocation2 + $0x38] sm:$0xff]
    %v63 = vld [vmem:[#allocation2 + $0x40] sm:$0xff]
    %v64 = vld [vmem:[#allocation2 + $0x48] sm:$0xff]
    %v65 = vld [vmem:[#allocation2 + $0x50] sm:$0xff]
    %v66 = vld [vmem:[#allocation2 + $0x58] sm:$0xff]
    %v67 = vld [vmem:[#allocation2 + $0x60] sm:$0xff]
    %v68 = vld [vmem:[#allocation2 + $0x68] sm:$0xff]
    %v69 = vld [vmem:[#allocation2 + $0x70] sm:$0xff]
    %v70 = vld [vmem:[#allocation2 + $0x78] sm:$0xff]
    %v71 = vld [vmem:[#allocation2 + $0x80] sm:$0xff]
    %v72 = vld [vmem:[#allocation2 + $0x88] sm:$0xff]
    %v73 = vpack.c.bf16 %v56, %v55
    %v74 = vpack.c.bf16 %v58, %v57
    %v75 = vpack.c.bf16 %v60, %v59
    %v76 = vpack.c.bf16 %v62, %v61
    %v77 = vpack.c.bf16 %v64, %v63
    %v78 = vpack.c.bf16 %v66, %v65
    %v79 = vpack.c.bf16 %v68, %v67
    %v80 = vpack.c.bf16 %v70, %v69
    %v81 = vpack.c.bf16 %v72, %v71
    %v82 = vld [vmem:[#allocation5] sm:$0xff]
    %v83 = vld [vmem:[#allocation5 + $0x8] sm:$0xff]
    %v84 = vld [vmem:[#allocation5 + $0x10] sm:$0xff]
    %v85 = vld [vmem:[#allocation5 + $0x18] sm:$0xff]
    %v86 = vld [vmem:[#allocation5 + $0x20] sm:$0xff]
    %v87 = vld [vmem:[#allocation5 + $0x28] sm:$0xff]
    %v88 = vld [vmem:[#allocation5 + $0x30] sm:$0xff]
    %v89 = vld [vmem:[#allocation5 + $0x38] sm:$0xff]
    %v90 = vld [vmem:[#allocation5 + $0x40] sm:$0xff]
    %v91 = vld [vmem:[#allocation5 + $0x48] sm:$0xff]
    %v92 = vld [vmem:[#allocation5 + $0x50] sm:$0xff]
    %v93 = vld [vmem:[#allocation5 + $0x58] sm:$0xff]
    %v94 = vld [vmem:[#allocation5 + $0x60] sm:$0xff]
    %v95 = vld [vmem:[#allocation5 + $0x68] sm:$0xff]
    %v96 = vld [vmem:[#allocation5 + $0x70] sm:$0xff]
    %v97 = vld [vmem:[#allocation5 + $0x78] sm:$0xff]
    %v98 = vld [vmem:[#allocation5 + $0x80] sm:$0xff]
    %v99 = vld [vmem:[#allocation5 + $0x88] sm:$0xff]
    %v100 = vld [vmem:[#allocation5 + $0x90] sm:$0xff]
    %v101 = vld [vmem:[#allocation5 + $0x98] sm:$0xff]
    %v102 = vld [vmem:[#allocation5 + $0xa0] sm:$0xff]
    %v103 = vld [vmem:[#allocation5 + $0xa8] sm:$0xff]
    %v104 = vld [vmem:[#allocation5 + $0xb0] sm:$0xff]
    %v105 = vld [vmem:[#allocation5 + $0xb8] sm:$0xff]
    %v106 = vld [vmem:[#allocation5 + $0xc0] sm:$0xff]
    %v107 = vld [vmem:[#allocation5 + $0xc8] sm:$0xff]
    %v108 = vld [vmem:[#allocation5 + $0xd0] sm:$0xff]
    %v109 = vld [vmem:[#allocation5 + $0xd8] sm:$0xff]
    %v110 = vld [vmem:[#allocation5 + $0xe0] sm:$0xff]
    %v111 = vld [vmem:[#allocation5 + $0xe8] sm:$0xff]
    %v112 = vld [vmem:[#allocation5 + $0xf0] sm:$0xff]
    %v113 = vld [vmem:[#allocation5 + $0xf8] sm:$0xff]
    %v114 = vld [vmem:[#allocation5 + $0x100] sm:$0xff]
    %v115 = vld [vmem:[#allocation5 + $0x108] sm:$0xff]
    %v116 = vld [vmem:[#allocation5 + $0x110] sm:$0xff]
    %v117 = vld [vmem:[#allocation5 + $0x118] sm:$0xff]
    %v118 = vld [vmem:[#allocation5 + $0x120] sm:$0xff]
    %v119 = vld [vmem:[#allocation5 + $0x128] sm:$0xff]
    %v120 = vld [vmem:[#allocation5 + $0x130] sm:$0xff]
    %v121 = vld [vmem:[#allocation5 + $0x138] sm:$0xff]
    %v122 = vld [vmem:[#allocation5 + $0x140] sm:$0x33]
    %v123 = vld [vmem:[#allocation5 + $0x148] sm:$0x33]
    %v124 = vld [vmem:[#allocation5 + $0x150] sm:$0x33]
    %v125 = vld [vmem:[#allocation5 + $0x158] sm:$0x33]
    %v126 = vld [vmem:[#allocation7] sm:$0xff]
    %v128 = vlaneseq
    %v129 = vshrl.u32 %v128, 7
    %v130 = vsub.s32 0, %v129
    %v131 = vrot.slane %v126, %v130
    %v132 = vlaneseq
    %v133 = vshrl.u32 %v132, 7
    %v134 = vsub.s32 1, %v133
    %v135 = vrot.slane %v126, %v134
    %v136 = vlaneseq
    %v137 = vshrl.u32 %v136, 7
    %v138 = vsub.s32 2, %v137
    %v139 = vrot.slane %v126, %v138
    %v140 = vlaneseq
    %v141 = vshrl.u32 %v140, 7
    %v142 = vsub.s32 3, %v141
    %v143 = vrot.slane %v126, %v142
    %v144 = vlaneseq
    %v145 = vshrl.u32 %v144, 7
    %v146 = vsub.s32 4, %v145
    %v147 = vrot.slane %v126, %v146
    %v148 = vlaneseq
    %v149 = vshrl.u32 %v148, 7
    %v150 = vsub.s32 5, %v149
    %v151 = vrot.slane %v126, %v150
    %v152 = vlaneseq
    %v153 = vshrl.u32 %v152, 7
    %v154 = vsub.s32 6, %v153
    %v155 = vrot.slane %v126, %v154
    %v156 = vlaneseq
    %v157 = vshrl.u32 %v156, 7
    %v158 = vsub.s32 7, %v157
    %v159 = vrot.slane %v126, %v158
    %v212 = vunpack.c.l.b16 %v82
    %v213 = vunpack.c.h.b16 %v82
    %v214 = vunpack.c.l.b16 %v83
    %v215 = vunpack.c.h.b16 %v83
    %v216 = vunpack.c.l.b16 %v84
    %v217 = vunpack.c.h.b16 %v84
    %v218 = vunpack.c.l.b16 %v85
    %v219 = vunpack.c.h.b16 %v85
    %v220 = vunpack.c.l.b16 %v86
    %v221 = vunpack.c.h.b16 %v86
    %v222 = vunpack.c.l.b16 %v87
    %v223 = vunpack.c.h.b16 %v87
    %v224 = vunpack.c.l.b16 %v88
    %v225 = vunpack.c.h.b16 %v88
    %v226 = vunpack.c.l.b16 %v89
    %v227 = vunpack.c.h.b16 %v89
    %v228 = vunpack.c.l.b16 %v90
    %v229 = vunpack.c.h.b16 %v90
    %v230 = vunpack.c.l.b16 %v91
    %v231 = vunpack.c.h.b16 %v91
    %v232 = vunpack.c.l.b16 %v92
    %v233 = vunpack.c.h.b16 %v92
    %v234 = vunpack.c.l.b16 %v93
    %v235 = vunpack.c.h.b16 %v93
    %v236 = vunpack.c.l.b16 %v94
    %v237 = vunpack.c.h.b16 %v94
    %v238 = vunpack.c.l.b16 %v95
    %v239 = vunpack.c.h.b16 %v95
    %v240 = vunpack.c.l.b16 %v96
    %v241 = vunpack.c.h.b16 %v96
    %v242 = vunpack.c.l.b16 %v97
    %v243 = vunpack.c.h.b16 %v97
    %v244 = vunpack.c.l.b16 %v98
    %v245 = vunpack.c.h.b16 %v98
    %v246 = vunpack.c.l.b16 %v99
    %v247 = vunpack.c.h.b16 %v99
    %v248 = vunpack.c.l.b16 %v100
    %v249 = vunpack.c.h.b16 %v100
    %v250 = vunpack.c.l.b16 %v101
    %v251 = vunpack.c.h.b16 %v101
    %v252 = vunpack.c.l.b16 %v102
    %v253 = vunpack.c.h.b16 %v102
    %v254 = vunpack.c.l.b16 %v103
    %v255 = vunpack.c.h.b16 %v103
    %v256 = vunpack.c.l.b16 %v104
    %v257 = vunpack.c.h.b16 %v104
    %v258 = vunpack.c.l.b16 %v105
    %v259 = vunpack.c.h.b16 %v105
    %v260 = vunpack.c.l.b16 %v106
    %v261 = vunpack.c.h.b16 %v106
    %v262 = vunpack.c.l.b16 %v107
    %v263 = vunpack.c.h.b16 %v107
    %v264 = vunpack.c.l.b16 %v108
    %v265 = vunpack.c.h.b16 %v108
    %v266 = vunpack.c.l.b16 %v109
    %v267 = vunpack.c.h.b16 %v109
    %v268 = vunpack.c.l.b16 %v110
    %v269 = vunpack.c.h.b16 %v110
    %v270 = vunpack.c.l.b16 %v111
    %v271 = vunpack.c.h.b16 %v111
    %v272 = vunpack.c.l.b16 %v112
    %v273 = vunpack.c.h.b16 %v112
    %v274 = vunpack.c.l.b16 %v113
    %v275 = vunpack.c.h.b16 %v113
    %v276 = vunpack.c.l.b16 %v114
    %v277 = vunpack.c.h.b16 %v114
    %v278 = vunpack.c.l.b16 %v115
    %v279 = vunpack.c.h.b16 %v115
    %v280 = vunpack.c.l.b16 %v116
    %v281 = vunpack.c.h.b16 %v116
    %v282 = vunpack.c.l.b16 %v117
    %v283 = vunpack.c.h.b16 %v117
    %v284 = vunpack.c.l.b16 %v118
    %v285 = vunpack.c.h.b16 %v118
    %v286 = vunpack.c.l.b16 %v119
    %v287 = vunpack.c.h.b16 %v119
    %v288 = vunpack.c.l.b16 %v120
    %v289 = vunpack.c.h.b16 %v120
    %v290 = vunpack.c.l.b16 %v121
    %v291 = vunpack.c.h.b16 %v121
    %v292 = vunpack.c.l.b16 %v122
    %v293 = vunpack.c.h.b16 %v122
    %v294 = vunpack.c.l.b16 %v123
    %v295 = vunpack.c.h.b16 %v123
    %v296 = vunpack.c.l.b16 %v124
    %v297 = vunpack.c.h.b16 %v124
    %v298 = vunpack.c.l.b16 %v125
    %v299 = vunpack.c.h.b16 %v125
    %v300 = vpack.c.b16 %v220, %v212
    %v301 = vpack.c.b16 %v221, %v213
    %v302 = vpack.c.b16 %v222, %v214
    %v303 = vpack.c.b16 %v223, %v215
    %v304 = vpack.c.b16 %v224, %v216
    %v305 = vpack.c.b16 %v225, %v217
    %v306 = vpack.c.b16 %v226, %v218
    %v307 = vpack.c.b16 %v227, %v219
    %v308 = vpack.c.b16 %v236, %v228
    %v309 = vpack.c.b16 %v237, %v229
    %v310 = vpack.c.b16 %v238, %v230
    %v311 = vpack.c.b16 %v239, %v231
    %v312 = vpack.c.b16 %v240, %v232
    %v313 = vpack.c.b16 %v241, %v233
    %v314 = vpack.c.b16 %v242, %v234
    %v315 = vpack.c.b16 %v243, %v235
    %v316 = vpack.c.b16 %v252, %v244
    %v317 = vpack.c.b16 %v253, %v245
    %v318 = vpack.c.b16 %v254, %v246
    %v319 = vpack.c.b16 %v255, %v247
    %v320 = vpack.c.b16 %v256, %v248
    %v321 = vpack.c.b16 %v257, %v249
    %v322 = vpack.c.b16 %v258, %v250
    %v323 = vpack.c.b16 %v259, %v251
    %v324 = vpack.c.b16 %v268, %v260
    %v325 = vpack.c.b16 %v269, %v261
    %v326 = vpack.c.b16 %v270, %v262
    %v327 = vpack.c.b16 %v271, %v263
    %v328 = vpack.c.b16 %v272, %v264
    %v329 = vpack.c.b16 %v273, %v265
    %v330 = vpack.c.b16 %v274, %v266
    %v331 = vpack.c.b16 %v275, %v267
    %v332 = vpack.c.b16 %v284, %v276
    %v333 = vpack.c.b16 %v285, %v277
    %v334 = vpack.c.b16 %v286, %v278
    %v335 = vpack.c.b16 %v287, %v279
    %v336 = vpack.c.b16 %v288, %v280
    %v337 = vpack.c.b16 %v289, %v281
    %v338 = vpack.c.b16 %v290, %v282
    %v339 = vpack.c.b16 %v291, %v283
    %v340 = vpack.c.b16 %v292, %v292
    %v341 = vpack.c.b16 %v293, %v293
    %v342 = vpack.c.b16 %v294, %v294
    %v343 = vpack.c.b16 %v295, %v295
    %v344 = vpack.c.b16 %v296, %v296
    %v345 = vpack.c.b16 %v297, %v297
    %v346 = vpack.c.b16 %v298, %v298
    %v347 = vpack.c.b16 %v299, %v299
    %vm388 = vcmask 687104
    %v390 = vsel %vm388, %v73, 0
    %v393 = vsel %vm388, %v74, 0
    %v396 = vsel %vm388, %v75, 0
    %v399 = vsel %vm388, %v76, 0
    %v402 = vsel %vm388, %v77, 0
    %v405 = vsel %vm388, %v78, 0
    %v408 = vsel %vm388, %v79, 0
    %v411 = vsel %vm388, %v80, 0
    %v414 = vsel %vm388, %v81, 0
    %vm416 = vcmask 1041408
    %v418 = vsel %vm416, %v340, 0
    %v421 = vsel %vm416, %v341, 0
    %v424 = vsel %vm416, %v342, 0
    %v427 = vsel %vm416, %v343, 0
    %v430 = vsel %vm416, %v344, 0
    %v433 = vsel %vm416, %v345, 0
    %v436 = vsel %vm416, %v346, 0
    %v439 = vsel %vm416, %v347, 0
    %441 = vmatprep.subr.bf16.mxu0 %v301
    %442 = vmatpush1.bf16.msra.mxu0 %v300
    %443 = vmatprep.subr.bf16.mxu0 %v309
    %444 = vmatpush1.bf16.msra.mxu0 %v308
    %445 = vmatprep.subr.bf16.mxu0 %v317
    %446 = vmatpush1.bf16.msra.mxu0 %v316
    %447 = vmatprep.subr.bf16.mxu0 %v325
    %448 = vmatpush1.bf16.msra.mxu0 %v324
    %449 = vmatprep.subr.bf16.mxu0 %v333
    %450 = vmatpush1.bf16.msra.mxu0 %v332
    %451 = vmatprep.subr.bf16.mxu0 %v421
    %452 = vmatpush1.bf16.msra.mxu0 %v418
    %453 = vmatprep.subr.bf16.mxu0 0
    %454 = vmatpush1.bf16.msra.mxu0 0
    %455 = vmatprep.subr.bf16.mxu0 0
    %456 = vmatpush1.bf16.msra.mxu0 0
    %457 = vmatprep.subr.bf16.mxu0 0
    %458 = vmatpush1.bf16.msra.mxu0 0
    %459 = vmatprep.subr.bf16.mxu0 0
    %460 = vmatpush1.bf16.msra.mxu0 0
    %461 = vmatprep.subr.bf16.mxu0 0
    %462 = vmatpush1.bf16.msra.mxu0 0
    %463 = vmatprep.subr.bf16.mxu0 0
    %464 = vmatpush1.bf16.msra.mxu0 0
    %465 = vmatprep.subr.bf16.mxu0 0
    %466 = vmatpush1.bf16.msra.mxu0 0
    %467 = vmatprep.subr.bf16.mxu0 0
    %468 = vmatpush1.bf16.msra.mxu0 0
    %469 = vmatprep.subr.bf16.mxu0 0
    %470 = vmatpush1.bf16.msra.mxu0 0
    %471 = vmatprep.subr.bf16.mxu0 0
    %472 = vmatpush1.bf16.msra.mxu0 0
    %473 = vmatprep.mubr.bf16.mxu0 0
    %474 = vmatmul.mubr.bf16.gmra.mrb[0].mxu0 %v390
    %v475 = vpop.f32.mrb[0].mxu0
    %v476 = vadd.f32 %v131, %v475
    %v477 = vpop.f32.mrb[0].mxu0
    %v478 = vadd.f32 %v135, %v477
    %v479 = vpop.f32.mrb[0].mxu0
    %v480 = vadd.f32 %v131, %v479
    %v481 = vpop.f32.mrb[0].mxu0
    %v482 = vadd.f32 %v135, %v481
    %483 = vmatprep.mubr.bf16.mxu0 0
    %484 = vmatmul.mubr.bf16.gmra.mrb[0].mxu0 %v393
    %v485 = vpop.f32.mrb[0].mxu0
    %v486 = vadd.f32 %v131, %v485
    %v487 = vpop.f32.mrb[0].mxu0
    %v488 = vadd.f32 %v135, %v487
    %v489 = vpop.f32.mrb[0].mxu0
    %v490 = vadd.f32 %v131, %v489
    %v491 = vpop.f32.mrb[0].mxu0
    %v492 = vadd.f32 %v135, %v491
    %493 = vmatprep.mubr.bf16.mxu0 0
    %494 = vmatmul.mubr.bf16.gmra.mrb[0].mxu0 %v396
    %v495 = vpop.f32.mrb[0].mxu0
    %v496 = vadd.f32 %v131, %v495
    %v497 = vpop.f32.mrb[0].mxu0
    %v498 = vadd.f32 %v135, %v497
    %v499 = vpop.f32.mrb[0].mxu0
    %v500 = vadd.f32 %v131, %v499
    %v501 = vpop.f32.mrb[0].mxu0
    %v502 = vadd.f32 %v135, %v501
    %503 = vmatprep.mubr.bf16.mxu0 0
    %504 = vmatmul.mubr.bf16.gmra.mrb[0].mxu0 %v399
    %v505 = vpop.f32.mrb[0].mxu0
    %v506 = vadd.f32 %v131, %v505
    %v507 = vpop.f32.mrb[0].mxu0
    %v508 = vadd.f32 %v135, %v507
    %v509 = vpop.f32.mrb[0].mxu0
    %v510 = vadd.f32 %v131, %v509
    %v511 = vpop.f32.mrb[0].mxu0
    %v512 = vadd.f32 %v135, %v511
    %513 = vmatprep.mubr.bf16.mxu0 0
    %514 = vmatmul.mubr.bf16.gmra.mrb[0].mxu0 %v402
    %v515 = vpop.f32.mrb[0].mxu0
    %v516 = vadd.f32 %v131, %v515
    %v517 = vpop.f32.mrb[0].mxu0
    %v518 = vadd.f32 %v135, %v517
    %v519 = vpop.f32.mrb[0].mxu0
    %v520 = vadd.f32 %v131, %v519
    %v521 = vpop.f32.mrb[0].mxu0
    %v522 = vadd.f32 %v135, %v521
    %523 = vmatprep.mubr.bf16.mxu0 0
    %524 = vmatmul.mubr.bf16.gmra.mrb[0].mxu0 %v405
    %v525 = vpop.f32.mrb[0].mxu0
    %v526 = vadd.f32 %v131, %v525
    %v527 = vpop.f32.mrb[0].mxu0
    %v528 = vadd.f32 %v135, %v527
    %v529 = vpop.f32.mrb[0].mxu0
    %v530 = vadd.f32 %v131, %v529
    %v531 = vpop.f32.mrb[0].mxu0
    %v532 = vadd.f32 %v135, %v531
    %533 = vmatprep.mubr.bf16.mxu0 0
    %534 = vmatmul.mubr.bf16.gmra.mrb[0].mxu0 %v408
    %v535 = vpop.f32.mrb[0].mxu0
    %v536 = vadd.f32 %v131, %v535
    %v537 = vpop.f32.mrb[0].mxu0
    %v538 = vadd.f32 %v135, %v537
    %v539 = vpop.f32.mrb[0].mxu0
    %v540 = vadd.f32 %v131, %v539
    %v541 = vpop.f32.mrb[0].mxu0
    %v542 = vadd.f32 %v135, %v541
    %543 = vmatprep.mubr.bf16.mxu0 0
    %544 = vmatmul.mubr.bf16.gmra.mrb[0].mxu0 %v411
    %v545 = vpop.f32.mrb[0].mxu0
    %v546 = vadd.f32 %v131, %v545
    %v547 = vpop.f32.mrb[0].mxu0
    %v548 = vadd.f32 %v135, %v547
    %v549 = vpop.f32.mrb[0].mxu0
    %v550 = vadd.f32 %v131, %v549
    %v551 = vpop.f32.mrb[0].mxu0
    %v552 = vadd.f32 %v135, %v551
    %553 = vmatprep.mubr.bf16.mxu0 0
    %554 = vmatmul.mubr.bf16.gmra.mrb[0].mxu0 %v414
    %v555 = vpop.f32.mrb[0].mxu0
    %v556 = vadd.f32 %v131, %v555
    %v557 = vpop.f32.mrb[0].mxu0
    %v558 = vadd.f32 %v135, %v557
    %v559 = vpop.f32.mrb[0].mxu0
    %v560 = vadd.f32 %v131, %v559
    %v561 = vpop.f32.mrb[0].mxu0
    %v562 = vadd.f32 %v135, %v561
    %563 = vdwg.mxu0
    %564 = vmatprep.subr.bf16.mxu0 %v303
    %565 = vmatpush1.bf16.msra.mxu0 %v302
    %566 = vmatprep.subr.bf16.mxu0 %v311
    %567 = vmatpush1.bf16.msra.mxu0 %v310
    %568 = vmatprep.subr.bf16.mxu0 %v319
    %569 = vmatpush1.bf16.msra.mxu0 %v318
    %570 = vmatprep.subr.bf16.mxu0 %v327
    %571 = vmatpush1.bf16.msra.mxu0 %v326
    %572 = vmatprep.subr.bf16.mxu0 %v335
    %573 = vmatpush1.bf16.msra.mxu0 %v334
    %574 = vmatprep.subr.bf16.mxu0 %v427
    %575 = vmatpush1.bf16.msra.mxu0 %v424
    %576 = vmatprep.subr.bf16.mxu0 0
    %577 = vmatpush1.bf16.msra.mxu0 0
    %578 = vmatprep.subr.bf16.mxu0 0
    %579 = vmatpush1.bf16.msra.mxu0 0
    %580 = vmatprep.subr.bf16.mxu0 0
    %581 = vmatpush1.bf16.msra.mxu0 0
    %582 = vmatprep.subr.bf16.mxu0 0
    %583 = vmatpush1.bf16.msra.mxu0 0
    %584 = vmatprep.subr.bf16.mxu0 0
    %585 = vmatpush1.bf16.msra.mxu0 0
    %586 = vmatprep.subr.bf16.mxu0 0
    %587 = vmatpush1.bf16.msra.mxu0 0
    %588 = vmatprep.subr.bf16.mxu0 0
    %589 = vmatpush1.bf16.msra.mxu0 0
    %590 = vmatprep.subr.bf16.mxu0 0
    %591 = vmatpush1.bf16.msra.mxu0 0
    %592 = vmatprep.subr.bf16.mxu0 0
    %593 = vmatpush1.bf16.msra.mxu0 0
    %594 = vmatprep.subr.bf16.mxu0 0
    %595 = vmatpush1.bf16.msra.mxu0 0
    %596 = vmatprep.mubr.bf16.mxu0 0
    %597 = vmatmul.mubr.bf16.gmra.mrb[0].mxu0 %v390
    %v598 = vpop.f32.mrb[0].mxu0
    %v599 = vadd.f32 %v139, %v598
    %v600 = vpop.f32.mrb[0].mxu0
    %v601 = vadd.f32 %v143, %v600
    %v602 = vpop.f32.mrb[0].mxu0
    %v603 = vadd.f32 %v139, %v602
    %v604 = vpop.f32.mrb[0].mxu0
    %v605 = vadd.f32 %v143, %v604
    %606 = vmatprep.mubr.bf16.mxu0 0
    %607 = vmatmul.mubr.bf16.gmra.mrb[0].mxu0 %v393
    %v608 = vpop.f32.mrb[0].mxu0
    %v609 = vadd.f32 %v139, %v608
    %v610 = vpop.f32.mrb[0].mxu0
    %v611 = vadd.f32 %v143, %v610
    %v612 = vpop.f32.mrb[0].mxu0
    %v613 = vadd.f32 %v139, %v612
    %v614 = vpop.f32.mrb[0].mxu0
    %v615 = vadd.f32 %v143, %v614
    %616 = vmatprep.mubr.bf16.mxu0 0
    %617 = vmatmul.mubr.bf16.gmra.mrb[0].mxu0 %v396
    %v618 = vpop.f32.mrb[0].mxu0
    %v619 = vadd.f32 %v139, %v618
    %v620 = vpop.f32.mrb[0].mxu0
    %v621 = vadd.f32 %v143, %v620
    %v622 = vpop.f32.mrb[0].mxu0
    %v623 = vadd.f32 %v139, %v622
    %v624 = vpop.f32.mrb[0].mxu0
    %v625 = vadd.f32 %v143, %v624
    %626 = vmatprep.mubr.bf16.mxu0 0
    %627 = vmatmul.mubr.bf16.gmra.mrb[0].mxu0 %v399
    %v628 = vpop.f32.mrb[0].mxu0
    %v629 = vadd.f32 %v139, %v628
    %v630 = vpop.f32.mrb[0].mxu0
    %v631 = vadd.f32 %v143, %v630
    %v632 = vpop.f32.mrb[0].mxu0
    %v633 = vadd.f32 %v139, %v632
    %v634 = vpop.f32.mrb[0].mxu0
    %v635 = vadd.f32 %v143, %v634
    %636 = vmatprep.mubr.bf16.mxu0 0
    %637 = vmatmul.mubr.bf16.gmra.mrb[0].mxu0 %v402
    %v638 = vpop.f32.mrb[0].mxu0
    %v639 = vadd.f32 %v139, %v638
    %v640 = vpop.f32.mrb[0].mxu0
    %v641 = vadd.f32 %v143, %v640
    %v642 = vpop.f32.mrb[0].mxu0
    %v643 = vadd.f32 %v139, %v642
    %v644 = vpop.f32.mrb[0].mxu0
    %v645 = vadd.f32 %v143, %v644
    %646 = vmatprep.mubr.bf16.mxu0 0
    %647 = vmatmul.mubr.bf16.gmra.mrb[0].mxu0 %v405
    %v648 = vpop.f32.mrb[0].mxu0
    %v649 = vadd.f32 %v139, %v648
    %v650 = vpop.f32.mrb[0].mxu0
    %v651 = vadd.f32 %v143, %v650
    %v652 = vpop.f32.mrb[0].mxu0
    %v653 = vadd.f32 %v139, %v652
    %v654 = vpop.f32.mrb[0].mxu0
    %v655 = vadd.f32 %v143, %v654
    %656 = vmatprep.mubr.bf16.mxu0 0
    %657 = vmatmul.mubr.bf16.gmra.mrb[0].mxu0 %v408
    %v658 = vpop.f32.mrb[0].mxu0
    %v659 = vadd.f32 %v139, %v658
    %v660 = vpop.f32.mrb[0].mxu0
    %v661 = vadd.f32 %v143, %v660
    %v662 = vpop.f32.mrb[0].mxu0
    %v663 = vadd.f32 %v139, %v662
    %v664 = vpop.f32.mrb[0].mxu0
    %v665 = vadd.f32 %v143, %v664
    %666 = vmatprep.mubr.bf16.mxu0 0
    %667 = vmatmul.mubr.bf16.gmra.mrb[0].mxu0 %v411
    %v668 = vpop.f32.mrb[0].mxu0
    %v669 = vadd.f32 %v139, %v668
    %v670 = vpop.f32.mrb[0].mxu0
    %v671 = vadd.f32 %v143, %v670
    %v672 = vpop.f32.mrb[0].mxu0
    %v673 = vadd.f32 %v139, %v672
    %v674 = vpop.f32.mrb[0].mxu0
    %v675 = vadd.f32 %v143, %v674
    %676 = vmatprep.mubr.bf16.mxu0 0
    %677 = vmatmul.mubr.bf16.gmra.mrb[0].mxu0 %v414
    %v678 = vpop.f32.mrb[0].mxu0
    %v679 = vadd.f32 %v139, %v678
    %v680 = vpop.f32.mrb[0].mxu0
    %v681 = vadd.f32 %v143, %v680
    %v682 = vpop.f32.mrb[0].mxu0
    %v683 = vadd.f32 %v139, %v682
    %v684 = vpop.f32.mrb[0].mxu0
    %v685 = vadd.f32 %v143, %v684
    %686 = vdwg.mxu0
    %687 = vmatprep.subr.bf16.mxu0 %v305
    %688 = vmatpush1.bf16.msra.mxu0 %v304
    %689 = vmatprep.subr.bf16.mxu0 %v313
    %690 = vmatpush1.bf16.msra.mxu0 %v312
    %691 = vmatprep.subr.bf16.mxu0 %v321
    %692 = vmatpush1.bf16.msra.mxu0 %v320
    %693 = vmatprep.subr.bf16.mxu0 %v329
    %694 = vmatpush1.bf16.msra.mxu0 %v328
    %695 = vmatprep.subr.bf16.mxu0 %v337
    %696 = vmatpush1.bf16.msra.mxu0 %v336
    %697 = vmatprep.subr.bf16.mxu0 %v433
    %698 = vmatpush1.bf16.msra.mxu0 %v430
    %699 = vmatprep.subr.bf16.mxu0 0
    %700 = vmatpush1.bf16.msra.mxu0 0
    %701 = vmatprep.subr.bf16.mxu0 0
    %702 = vmatpush1.bf16.msra.mxu0 0
    %703 = vmatprep.subr.bf16.mxu0 0
    %704 = vmatpush1.bf16.msra.mxu0 0
    %705 = vmatprep.subr.bf16.mxu0 0
    %706 = vmatpush1.bf16.msra.mxu0 0
    %707 = vmatprep.subr.bf16.mxu0 0
    %708 = vmatpush1.bf16.msra.mxu0 0
    %709 = vmatprep.subr.bf16.mxu0 0
    %710 = vmatpush1.bf16.msra.mxu0 0
    %711 = vmatprep.subr.bf16.mxu0 0
    %712 = vmatpush1.bf16.msra.mxu0 0
    %713 = vmatprep.subr.bf16.mxu0 0
    %714 = vmatpush1.bf16.msra.mxu0 0
    %715 = vmatprep.subr.bf16.mxu0 0
    %716 = vmatpush1.bf16.msra.mxu0 0
    %717 = vmatprep.subr.bf16.mxu0 0
    %718 = vmatpush1.bf16.msra.mxu0 0
    %719 = vmatprep.mubr.bf16.mxu0 0
    %720 = vmatmul.mubr.bf16.gmra.mrb[0].mxu0 %v390
    %v721 = vpop.f32.mrb[0].mxu0
    %v722 = vadd.f32 %v147, %v721
    %v723 = vpop.f32.mrb[0].mxu0
    %v724 = vadd.f32 %v151, %v723
    %v725 = vpop.f32.mrb[0].mxu0
    %v726 = vadd.f32 %v147, %v725
    %v727 = vpop.f32.mrb[0].mxu0
    %v728 = vadd.f32 %v151, %v727
    %729 = vmatprep.mubr.bf16.mxu0 0
    %730 = vmatmul.mubr.bf16.gmra.mrb[0].mxu0 %v393
    %v731 = vpop.f32.mrb[0].mxu0
    %v732 = vadd.f32 %v147, %v731
    %v733 = vpop.f32.mrb[0].mxu0
    %v734 = vadd.f32 %v151, %v733
    %v735 = vpop.f32.mrb[0].mxu0
    %v736 = vadd.f32 %v147, %v735
    %v737 = vpop.f32.mrb[0].mxu0
    %v738 = vadd.f32 %v151, %v737
    %739 = vmatprep.mubr.bf16.mxu0 0
    %740 = vmatmul.mubr.bf16.gmra.mrb[0].mxu0 %v396
    %v741 = vpop.f32.mrb[0].mxu0
    %v742 = vadd.f32 %v147, %v741
    %v743 = vpop.f32.mrb[0].mxu0
    %v744 = vadd.f32 %v151, %v743
    %v745 = vpop.f32.mrb[0].mxu0
    %v746 = vadd.f32 %v147, %v745
    %v747 = vpop.f32.mrb[0].mxu0
    %v748 = vadd.f32 %v151, %v747
    %749 = vmatprep.mubr.bf16.mxu0 0
    %750 = vmatmul.mubr.bf16.gmra.mrb[0].mxu0 %v399
    %v751 = vpop.f32.mrb[0].mxu0
    %v752 = vadd.f32 %v147, %v751
    %v753 = vpop.f32.mrb[0].mxu0
    %v754 = vadd.f32 %v151, %v753
    %v755 = vpop.f32.mrb[0].mxu0
    %v756 = vadd.f32 %v147, %v755
    %v757 = vpop.f32.mrb[0].mxu0
    %v758 = vadd.f32 %v151, %v757
    %759 = vmatprep.mubr.bf16.mxu0 0
    %760 = vmatmul.mubr.bf16.gmra.mrb[0].mxu0 %v402
    %v761 = vpop.f32.mrb[0].mxu0
    %v762 = vadd.f32 %v147, %v761
    %v763 = vpop.f32.mrb[0].mxu0
    %v764 = vadd.f32 %v151, %v763
    %v765 = vpop.f32.mrb[0].mxu0
    %v766 = vadd.f32 %v147, %v765
    %v767 = vpop.f32.mrb[0].mxu0
    %v768 = vadd.f32 %v151, %v767
    %769 = vmatprep.mubr.bf16.mxu0 0
    %770 = vmatmul.mubr.bf16.gmra.mrb[0].mxu0 %v405
    %v771 = vpop.f32.mrb[0].mxu0
    %v772 = vadd.f32 %v147, %v771
    %v773 = vpop.f32.mrb[0].mxu0
    %v774 = vadd.f32 %v151, %v773
    %v775 = vpop.f32.mrb[0].mxu0
    %v776 = vadd.f32 %v147, %v775
    %v777 = vpop.f32.mrb[0].mxu0
    %v778 = vadd.f32 %v151, %v777
    %779 = vmatprep.mubr.bf16.mxu0 0
    %780 = vmatmul.mubr.bf16.gmra.mrb[0].mxu0 %v408
    %v781 = vpop.f32.mrb[0].mxu0
    %v782 = vadd.f32 %v147, %v781
    %v783 = vpop.f32.mrb[0].mxu0
    %v784 = vadd.f32 %v151, %v783
    %v785 = vpop.f32.mrb[0].mxu0
    %v786 = vadd.f32 %v147, %v785
    %v787 = vpop.f32.mrb[0].mxu0
    %v788 = vadd.f32 %v151, %v787
    %789 = vmatprep.mubr.bf16.mxu0 0
    %790 = vmatmul.mubr.bf16.gmra.mrb[0].mxu0 %v411
    %v791 = vpop.f32.mrb[0].mxu0
    %v792 = vadd.f32 %v147, %v791
    %v793 = vpop.f32.mrb[0].mxu0
    %v794 = vadd.f32 %v151, %v793
    %v795 = vpop.f32.mrb[0].mxu0
    %v796 = vadd.f32 %v147, %v795
    %v797 = vpop.f32.mrb[0].mxu0
    %v798 = vadd.f32 %v151, %v797
    %799 = vmatprep.mubr.bf16.mxu0 0
    %800 = vmatmul.mubr.bf16.gmra.mrb[0].mxu0 %v414
    %v801 = vpop.f32.mrb[0].mxu0
    %v802 = vadd.f32 %v147, %v801
    %v803 = vpop.f32.mrb[0].mxu0
    %v804 = vadd.f32 %v151, %v803
    %v805 = vpop.f32.mrb[0].mxu0
    %v806 = vadd.f32 %v147, %v805
    %v807 = vpop.f32.mrb[0].mxu0
    %v808 = vadd.f32 %v151, %v807
    %809 = vdwg.mxu0
    %810 = vmatprep.subr.bf16.mxu0 %v307
    %811 = vmatpush1.bf16.msra.mxu0 %v306
    %812 = vmatprep.subr.bf16.mxu0 %v315
    %813 = vmatpush1.bf16.msra.mxu0 %v314
    %814 = vmatprep.subr.bf16.mxu0 %v323
    %815 = vmatpush1.bf16.msra.mxu0 %v322
    %816 = vmatprep.subr.bf16.mxu0 %v331
    %817 = vmatpush1.bf16.msra.mxu0 %v330
    %818 = vmatprep.subr.bf16.mxu0 %v339
    %819 = vmatpush1.bf16.msra.mxu0 %v338
    %820 = vmatprep.subr.bf16.mxu0 %v439
    %821 = vmatpush1.bf16.msra.mxu0 %v436
    %822 = vmatprep.subr.bf16.mxu0 0
    %823 = vmatpush1.bf16.msra.mxu0 0
    %824 = vmatprep.subr.bf16.mxu0 0
    %825 = vmatpush1.bf16.msra.mxu0 0
    %826 = vmatprep.subr.bf16.mxu0 0
    %827 = vmatpush1.bf16.msra.mxu0 0
    %828 = vmatprep.subr.bf16.mxu0 0
    %829 = vmatpush1.bf16.msra.mxu0 0
    %830 = vmatprep.subr.bf16.mxu0 0
    %831 = vmatpush1.bf16.msra.mxu0 0
    %832 = vmatprep.subr.bf16.mxu0 0
    %833 = vmatpush1.bf16.msra.mxu0 0
    %834 = vmatprep.subr.bf16.mxu0 0
    %835 = vmatpush1.bf16.msra.mxu0 0
    %836 = vmatprep.subr.bf16.mxu0 0
    %837 = vmatpush1.bf16.msra.mxu0 0
    %838 = vmatprep.subr.bf16.mxu0 0
    %839 = vmatpush1.bf16.msra.mxu0 0
    %840 = vmatprep.subr.bf16.mxu0 0
    %841 = vmatpush1.bf16.msra.mxu0 0
    %842 = vmatprep.mubr.bf16.mxu0 0
    %843 = vmatmul.mubr.bf16.gmra.mrb[0].mxu0 %v390
    %v844 = vpop.f32.mrb[0].mxu0
    %v845 = vadd.f32 %v155, %v844
    %v846 = vpop.f32.mrb[0].mxu0
    %v847 = vadd.f32 %v159, %v846
    %v848 = vpop.f32.mrb[0].mxu0
    %v849 = vadd.f32 %v155, %v848
    %v850 = vpop.f32.mrb[0].mxu0
    %v851 = vadd.f32 %v159, %v850
    %852 = vmatprep.mubr.bf16.mxu0 0
    %853 = vmatmul.mubr.bf16.gmra.mrb[0].mxu0 %v393
    %v854 = vpop.f32.mrb[0].mxu0
    %v855 = vadd.f32 %v155, %v854
    %v856 = vpop.f32.mrb[0].mxu0
    %v857 = vadd.f32 %v159, %v856
    %v858 = vpop.f32.mrb[0].mxu0
    %v859 = vadd.f32 %v155, %v858
    %v860 = vpop.f32.mrb[0].mxu0
    %v861 = vadd.f32 %v159, %v860
    %862 = vmatprep.mubr.bf16.mxu0 0
    %863 = vmatmul.mubr.bf16.gmra.mrb[0].mxu0 %v396
    %v864 = vpop.f32.mrb[0].mxu0
    %v865 = vadd.f32 %v155, %v864
    %v866 = vpop.f32.mrb[0].mxu0
    %v867 = vadd.f32 %v159, %v866
    %v868 = vpop.f32.mrb[0].mxu0
    %v869 = vadd.f32 %v155, %v868
    %v870 = vpop.f32.mrb[0].mxu0
    %v871 = vadd.f32 %v159, %v870
    %872 = vmatprep.mubr.bf16.mxu0 0
    %873 = vmatmul.mubr.bf16.gmra.mrb[0].mxu0 %v399
    %v874 = vpop.f32.mrb[0].mxu0
    %v875 = vadd.f32 %v155, %v874
    %v876 = vpop.f32.mrb[0].mxu0
    %v877 = vadd.f32 %v159, %v876
    %v878 = vpop.f32.mrb[0].mxu0
    %v879 = vadd.f32 %v155, %v878
    %v880 = vpop.f32.mrb[0].mxu0
    %v881 = vadd.f32 %v159, %v880
    %882 = vmatprep.mubr.bf16.mxu0 0
    %883 = vmatmul.mubr.bf16.gmra.mrb[0].mxu0 %v402
    %v884 = vpop.f32.mrb[0].mxu0
    %v885 = vadd.f32 %v155, %v884
    %v886 = vpop.f32.mrb[0].mxu0
    %v887 = vadd.f32 %v159, %v886
    %v888 = vpop.f32.mrb[0].mxu0
    %v889 = vadd.f32 %v155, %v888
    %v890 = vpop.f32.mrb[0].mxu0
    %v891 = vadd.f32 %v159, %v890
    %892 = vmatprep.mubr.bf16.mxu0 0
    %893 = vmatmul.mubr.bf16.gmra.mrb[0].mxu0 %v405
    %v894 = vpop.f32.mrb[0].mxu0
    %v895 = vadd.f32 %v155, %v894
    %v896 = vpop.f32.mrb[0].mxu0
    %v897 = vadd.f32 %v159, %v896
    %v898 = vpop.f32.mrb[0].mxu0
    %v899 = vadd.f32 %v155, %v898
    %v900 = vpop.f32.mrb[0].mxu0
    %v901 = vadd.f32 %v159, %v900
    %902 = vmatprep.mubr.bf16.mxu0 0
    %903 = vmatmul.mubr.bf16.gmra.mrb[0].mxu0 %v408
    %v904 = vpop.f32.mrb[0].mxu0
    %v905 = vadd.f32 %v155, %v904
    %v906 = vpop.f32.mrb[0].mxu0
    %v907 = vadd.f32 %v159, %v906
    %v908 = vpop.f32.mrb[0].mxu0
    %v909 = vadd.f32 %v155, %v908
    %v910 = vpop.f32.mrb[0].mxu0
    %v911 = vadd.f32 %v159, %v910
    %912 = vmatprep.mubr.bf16.mxu0 0
    %913 = vmatmul.mubr.bf16.gmra.mrb[0].mxu0 %v411
    %v914 = vpop.f32.mrb[0].mxu0
    %v915 = vadd.f32 %v155, %v914
    %v916 = vpop.f32.mrb[0].mxu0
    %v917 = vadd.f32 %v159, %v916
    %v918 = vpop.f32.mrb[0].mxu0
    %v919 = vadd.f32 %v155, %v918
    %v920 = vpop.f32.mrb[0].mxu0
    %v921 = vadd.f32 %v159, %v920
    %922 = vmatprep.mubr.bf16.mxu0 0
    %923 = vmatmul.mubr.bf16.gmra.mrb[0].mxu0 %v414
    %v924 = vpop.f32.mrb[0].mxu0
    %v925 = vadd.f32 %v155, %v924
    %v926 = vpop.f32.mrb[0].mxu0
    %v927 = vadd.f32 %v159, %v926
    %v928 = vpop.f32.mrb[0].mxu0
    %v929 = vadd.f32 %v155, %v928
    %v930 = vpop.f32.mrb[0].mxu0
    %v931 = vadd.f32 %v159, %v930
    %932 = vdwg.mxu0
    %v933 = vpack.c.bf16 %v480, %v476
    %v934 = vpack.c.bf16 %v482, %v478
    %v935 = vpack.c.bf16 %v603, %v599
    %v936 = vpack.c.bf16 %v605, %v601
    %v937 = vpack.c.bf16 %v726, %v722
    %v938 = vpack.c.bf16 %v728, %v724
    %v939 = vpack.c.bf16 %v849, %v845
    %v940 = vpack.c.bf16 %v851, %v847
    %v941 = vpack.c.bf16 %v490, %v486
    %v942 = vpack.c.bf16 %v492, %v488
    %v943 = vpack.c.bf16 %v613, %v609
    %v944 = vpack.c.bf16 %v615, %v611
    %v945 = vpack.c.bf16 %v736, %v732
    %v946 = vpack.c.bf16 %v738, %v734
    %v947 = vpack.c.bf16 %v859, %v855
    %v948 = vpack.c.bf16 %v861, %v857
    %v949 = vpack.c.bf16 %v500, %v496
    %v950 = vpack.c.bf16 %v502, %v498
    %v951 = vpack.c.bf16 %v623, %v619
    %v952 = vpack.c.bf16 %v625, %v621
    %v953 = vpack.c.bf16 %v746, %v742
    %v954 = vpack.c.bf16 %v748, %v744
    %v955 = vpack.c.bf16 %v869, %v865
    %v956 = vpack.c.bf16 %v871, %v867
    %v957 = vpack.c.bf16 %v510, %v506
    %v958 = vpack.c.bf16 %v512, %v508
    %v959 = vpack.c.bf16 %v633, %v629
    %v960 = vpack.c.bf16 %v635, %v631
    %v961 = vpack.c.bf16 %v756, %v752
    %v962 = vpack.c.bf16 %v758, %v754
    %v963 = vpack.c.bf16 %v879, %v875
    %v964 = vpack.c.bf16 %v881, %v877
    %v965 = vpack.c.bf16 %v520, %v516
    %v966 = vpack.c.bf16 %v522, %v518
    %v967 = vpack.c.bf16 %v643, %v639
    %v968 = vpack.c.bf16 %v645, %v641
    %v969 = vpack.c.bf16 %v766, %v762
    %v970 = vpack.c.bf16 %v768, %v764
    %v971 = vpack.c.bf16 %v889, %v885
    %v972 = vpack.c.bf16 %v891, %v887
    %v973 = vpack.c.bf16 %v530, %v526
    %v974 = vpack.c.bf16 %v532, %v528
    %v975 = vpack.c.bf16 %v653, %v649
    %v976 = vpack.c.bf16 %v655, %v651
    %v977 = vpack.c.bf16 %v776, %v772
    %v978 = vpack.c.bf16 %v778, %v774
    %v979 = vpack.c.bf16 %v899, %v895
    %v980 = vpack.c.bf16 %v901, %v897
    %v981 = vpack.c.bf16 %v540, %v536
    %v982 = vpack.c.bf16 %v542, %v538
    %v983 = vpack.c.bf16 %v663, %v659
    %v984 = vpack.c.bf16 %v665, %v661
    %v985 = vpack.c.bf16 %v786, %v782
    %v986 = vpack.c.bf16 %v788, %v784
    %v987 = vpack.c.bf16 %v909, %v905
    %v988 = vpack.c.bf16 %v911, %v907
    %v989 = vpack.c.bf16 %v550, %v546
    %v990 = vpack.c.bf16 %v552, %v548
    %v991 = vpack.c.bf16 %v673, %v669
    %v992 = vpack.c.bf16 %v675, %v671
    %v993 = vpack.c.bf16 %v796, %v792
    %v994 = vpack.c.bf16 %v798, %v794
    %v995 = vpack.c.bf16 %v919, %v915
    %v996 = vpack.c.bf16 %v921, %v917
    %v997 = vpack.c.bf16 %v560, %v556
    %v998 = vpack.c.bf16 %v562, %v558
    %v999 = vpack.c.bf16 %v683, %v679
    %v1000 = vpack.c.bf16 %v685, %v681
    %v1001 = vpack.c.bf16 %v806, %v802
    %v1002 = vpack.c.bf16 %v808, %v804
    %v1003 = vpack.c.bf16 %v929, %v925
    %v1004 = vpack.c.bf16 %v931, %v927
    %v1077 = vunpack.c.l.b16 %v933
    %v1078 = vunpack.c.l.b16 %v934
    %v1079 = vunpack.c.l.b16 %v935
    %v1080 = vunpack.c.l.b16 %v936
    %v1081 = vunpack.c.l.b16 %v937
    %v1082 = vunpack.c.l.b16 %v938
    %v1083 = vunpack.c.l.b16 %v939
    %v1084 = vunpack.c.l.b16 %v940
    %v1085 = vunpack.c.h.b16 %v933
    %v1086 = vunpack.c.h.b16 %v934
    %v1087 = vunpack.c.h.b16 %v935
    %v1088 = vunpack.c.h.b16 %v936
    %v1089 = vunpack.c.h.b16 %v937
    %v1090 = vunpack.c.h.b16 %v938
    %v1091 = vunpack.c.h.b16 %v939
    %v1092 = vunpack.c.h.b16 %v940
    %v1093 = vunpack.c.l.b16 %v941
    %v1094 = vunpack.c.l.b16 %v942
    %v1095 = vunpack.c.l.b16 %v943
    %v1096 = vunpack.c.l.b16 %v944
    %v1097 = vunpack.c.l.b16 %v945
    %v1098 = vunpack.c.l.b16 %v946
    %v1099 = vunpack.c.l.b16 %v947
    %v1100 = vunpack.c.l.b16 %v948
    %v1101 = vunpack.c.h.b16 %v941
    %v1102 = vunpack.c.h.b16 %v942
    %v1103 = vunpack.c.h.b16 %v943
    %v1104 = vunpack.c.h.b16 %v944
    %v1105 = vunpack.c.h.b16 %v945
    %v1106 = vunpack.c.h.b16 %v946
    %v1107 = vunpack.c.h.b16 %v947
    %v1108 = vunpack.c.h.b16 %v948
    %v1109 = vunpack.c.l.b16 %v949
    %v1110 = vunpack.c.l.b16 %v950
    %v1111 = vunpack.c.l.b16 %v951
    %v1112 = vunpack.c.l.b16 %v952
    %v1113 = vunpack.c.l.b16 %v953
    %v1114 = vunpack.c.l.b16 %v954
    %v1115 = vunpack.c.l.b16 %v955
    %v1116 = vunpack.c.l.b16 %v956
    %v1117 = vunpack.c.h.b16 %v949
    %v1118 = vunpack.c.h.b16 %v950
    %v1119 = vunpack.c.h.b16 %v951
    %v1120 = vunpack.c.h.b16 %v952
    %v1121 = vunpack.c.h.b16 %v953
    %v1122 = vunpack.c.h.b16 %v954
    %v1123 = vunpack.c.h.b16 %v955
    %v1124 = vunpack.c.h.b16 %v956
    %v1125 = vunpack.c.l.b16 %v957
    %v1126 = vunpack.c.l.b16 %v958
    %v1127 = vunpack.c.l.b16 %v959
    %v1128 = vunpack.c.l.b16 %v960
    %v1129 = vunpack.c.l.b16 %v961
    %v1130 = vunpack.c.l.b16 %v962
    %v1131 = vunpack.c.l.b16 %v963
    %v1132 = vunpack.c.l.b16 %v964
    %v1133 = vunpack.c.h.b16 %v957
    %v1134 = vunpack.c.h.b16 %v958
    %v1135 = vunpack.c.h.b16 %v959
    %v1136 = vunpack.c.h.b16 %v960
    %v1137 = vunpack.c.h.b16 %v961
    %v1138 = vunpack.c.h.b16 %v962
    %v1139 = vunpack.c.h.b16 %v963
    %v1140 = vunpack.c.h.b16 %v964
    %v1141 = vunpack.c.l.b16 %v965
    %v1142 = vunpack.c.l.b16 %v966
    %v1143 = vunpack.c.l.b16 %v967
    %v1144 = vunpack.c.l.b16 %v968
    %v1145 = vunpack.c.l.b16 %v969
    %v1146 = vunpack.c.l.b16 %v970
    %v1147 = vunpack.c.l.b16 %v971
    %v1148 = vunpack.c.l.b16 %v972
    %v1149 = vunpack.c.h.b16 %v965
    %v1150 = vunpack.c.h.b16 %v966
    %v1151 = vunpack.c.h.b16 %v967
    %v1152 = vunpack.c.h.b16 %v968
    %v1153 = vunpack.c.h.b16 %v969
    %v1154 = vunpack.c.h.b16 %v970
    %v1155 = vunpack.c.h.b16 %v971
    %v1156 = vunpack.c.h.b16 %v972
    %v1157 = vunpack.c.l.b16 %v973
    %v1158 = vunpack.c.l.b16 %v974
    %v1159 = vunpack.c.l.b16 %v975
    %v1160 = vunpack.c.l.b16 %v976
    %v1161 = vunpack.c.l.b16 %v977
    %v1162 = vunpack.c.l.b16 %v978
    %v1163 = vunpack.c.l.b16 %v979
    %v1164 = vunpack.c.l.b16 %v980
    %v1165 = vunpack.c.h.b16 %v973
    %v1166 = vunpack.c.h.b16 %v974
    %v1167 = vunpack.c.h.b16 %v975
    %v1168 = vunpack.c.h.b16 %v976
    %v1169 = vunpack.c.h.b16 %v977
    %v1170 = vunpack.c.h.b16 %v978
    %v1171 = vunpack.c.h.b16 %v979
    %v1172 = vunpack.c.h.b16 %v980
    %v1173 = vunpack.c.l.b16 %v981
    %v1174 = vunpack.c.l.b16 %v982
    %v1175 = vunpack.c.l.b16 %v983
    %v1176 = vunpack.c.l.b16 %v984
    %v1177 = vunpack.c.l.b16 %v985
    %v1178 = vunpack.c.l.b16 %v986
    %v1179 = vunpack.c.l.b16 %v987
    %v1180 = vunpack.c.l.b16 %v988
    %v1181 = vunpack.c.h.b16 %v981
    %v1182 = vunpack.c.h.b16 %v982
    %v1183 = vunpack.c.h.b16 %v983
    %v1184 = vunpack.c.h.b16 %v984
    %v1185 = vunpack.c.h.b16 %v985
    %v1186 = vunpack.c.h.b16 %v986
    %v1187 = vunpack.c.h.b16 %v987
    %v1188 = vunpack.c.h.b16 %v988
    %v1189 = vunpack.c.l.b16 %v989
    %v1190 = vunpack.c.l.b16 %v990
    %v1191 = vunpack.c.l.b16 %v991
    %v1192 = vunpack.c.l.b16 %v992
    %v1193 = vunpack.c.l.b16 %v993
    %v1194 = vunpack.c.l.b16 %v994
    %v1195 = vunpack.c.l.b16 %v995
    %v1196 = vunpack.c.l.b16 %v996
    %v1197 = vunpack.c.h.b16 %v989
    %v1198 = vunpack.c.h.b16 %v990
    %v1199 = vunpack.c.h.b16 %v991
    %v1200 = vunpack.c.h.b16 %v992
    %v1201 = vunpack.c.h.b16 %v993
    %v1202 = vunpack.c.h.b16 %v994
    %v1203 = vunpack.c.h.b16 %v995
    %v1204 = vunpack.c.h.b16 %v996
    %v1205 = vunpack.c.l.b16 %v997
    %v1206 = vunpack.c.l.b16 %v998
    %v1207 = vunpack.c.l.b16 %v999
    %v1208 = vunpack.c.l.b16 %v1000
    %v1209 = vunpack.c.l.b16 %v1001
    %v1210 = vunpack.c.l.b16 %v1002
    %v1211 = vunpack.c.l.b16 %v1003
    %v1212 = vunpack.c.l.b16 %v1004
    %v1213 = vunpack.c.h.b16 %v997
    %v1214 = vunpack.c.h.b16 %v998
    %v1215 = vunpack.c.h.b16 %v999
    %v1216 = vunpack.c.h.b16 %v1000
    %v1217 = vunpack.c.h.b16 %v1001
    %v1218 = vunpack.c.h.b16 %v1002
    %v1219 = vunpack.c.h.b16 %v1003
    %v1220 = vunpack.c.h.b16 %v1004
    %v1221 = vpack.c.b16 %v1078, %v1077
    %v1222 = vpack.c.b16 %v1080, %v1079
    %v1223 = vpack.c.b16 %v1082, %v1081
    %v1224 = vpack.c.b16 %v1084, %v1083
    %v1225 = vpack.c.b16 %v1086, %v1085
    %v1226 = vpack.c.b16 %v1088, %v1087
    %v1227 = vpack.c.b16 %v1090, %v1089
    %v1228 = vpack.c.b16 %v1092, %v1091
    %v1229 = vpack.c.b16 %v1094, %v1093
    %v1230 = vpack.c.b16 %v1096, %v1095
    %v1231 = vpack.c.b16 %v1098, %v1097
    %v1232 = vpack.c.b16 %v1100, %v1099
    %v1233 = vpack.c.b16 %v1102, %v1101
    %v1234 = vpack.c.b16 %v1104, %v1103
    %v1235 = vpack.c.b16 %v1106, %v1105
    %v1236 = vpack.c.b16 %v1108, %v1107
    %v1237 = vpack.c.b16 %v1110, %v1109
    %v1238 = vpack.c.b16 %v1112, %v1111
    %v1239 = vpack.c.b16 %v1114, %v1113
    %v1240 = vpack.c.b16 %v1116, %v1115
    %v1241 = vpack.c.b16 %v1118, %v1117
    %v1242 = vpack.c.b16 %v1120, %v1119
    %v1243 = vpack.c.b16 %v1122, %v1121
    %v1244 = vpack.c.b16 %v1124, %v1123
    %v1245 = vpack.c.b16 %v1126, %v1125
    %v1246 = vpack.c.b16 %v1128, %v1127
    %v1247 = vpack.c.b16 %v1130, %v1129
    %v1248 = vpack.c.b16 %v1132, %v1131
    %v1249 = vpack.c.b16 %v1134, %v1133
    %v1250 = vpack.c.b16 %v1136, %v1135
    %v1251 = vpack.c.b16 %v1138, %v1137
    %v1252 = vpack.c.b16 %v1140, %v1139
    %v1253 = vpack.c.b16 %v1142, %v1141
    %v1254 = vpack.c.b16 %v1144, %v1143
    %v1255 = vpack.c.b16 %v1146, %v1145
    %v1256 = vpack.c.b16 %v1148, %v1147
    %v1257 = vpack.c.b16 %v1150, %v1149
    %v1258 = vpack.c.b16 %v1152, %v1151
    %v1259 = vpack.c.b16 %v1154, %v1153
    %v1260 = vpack.c.b16 %v1156, %v1155
    %v1261 = vpack.c.b16 %v1158, %v1157
    %v1262 = vpack.c.b16 %v1160, %v1159
    %v1263 = vpack.c.b16 %v1162, %v1161
    %v1264 = vpack.c.b16 %v1164, %v1163
    %v1265 = vpack.c.b16 %v1166, %v1165
    %v1266 = vpack.c.b16 %v1168, %v1167
    %v1267 = vpack.c.b16 %v1170, %v1169
    %v1268 = vpack.c.b16 %v1172, %v1171
    %v1269 = vpack.c.b16 %v1174, %v1173
    %v1270 = vpack.c.b16 %v1176, %v1175
    %v1271 = vpack.c.b16 %v1178, %v1177
    %v1272 = vpack.c.b16 %v1180, %v1179
    %v1273 = vpack.c.b16 %v1182, %v1181
    %v1274 = vpack.c.b16 %v1184, %v1183
    %v1275 = vpack.c.b16 %v1186, %v1185
    %v1276 = vpack.c.b16 %v1188, %v1187
    %v1277 = vpack.c.b16 %v1190, %v1189
    %v1278 = vpack.c.b16 %v1192, %v1191
    %v1279 = vpack.c.b16 %v1194, %v1193
    %v1280 = vpack.c.b16 %v1196, %v1195
    %v1281 = vpack.c.b16 %v1198, %v1197
    %v1282 = vpack.c.b16 %v1200, %v1199
    %v1283 = vpack.c.b16 %v1202, %v1201
    %v1284 = vpack.c.b16 %v1204, %v1203
    %v1285 = vpack.c.b16 %v1206, %v1205
    %v1286 = vpack.c.b16 %v1208, %v1207
    %v1287 = vpack.c.b16 %v1210, %v1209
    %v1288 = vpack.c.b16 %v1212, %v1211
    %v1289 = vpack.c.b16 %v1214, %v1213
    %v1290 = vpack.c.b16 %v1216, %v1215
    %v1291 = vpack.c.b16 %v1218, %v1217
    %v1292 = vpack.c.b16 %v1220, %v1219
    %1365 = vst [vmem:[#allocation8] sm:$0xff] %v1221
    %1366 = vst [vmem:[#allocation8 + $0x8] sm:$0xff] %v1222
    %1367 = vst [vmem:[#allocation8 + $0x10] sm:$0xff] %v1223
    %1368 = vst [vmem:[#allocation8 + $0x18] sm:$0xff] %v1224
    %1369 = vst [vmem:[#allocation8 + $0x20] sm:$0xff] %v1225
    %1370 = vst [vmem:[#allocation8 + $0x28] sm:$0xff] %v1226
    %1371 = vst [vmem:[#allocation8 + $0x30] sm:$0xff] %v1227
    %1372 = vst [vmem:[#allocation8 + $0x38] sm:$0xff] %v1228
    %1373 = vst [vmem:[#allocation8 + $0x40] sm:$0xff] %v1229
    %1374 = vst [vmem:[#allocation8 + $0x48] sm:$0xff] %v1230
    %1375 = vst [vmem:[#allocation8 + $0x50] sm:$0xff] %v1231
    %1376 = vst [vmem:[#allocation8 + $0x58] sm:$0xff] %v1232
    %1377 = vst [vmem:[#allocation8 + $0x60] sm:$0xff] %v1233
    %1378 = vst [vmem:[#allocation8 + $0x68] sm:$0xff] %v1234
    %1379 = vst [vmem:[#allocation8 + $0x70] sm:$0xff] %v1235
    %1380 = vst [vmem:[#allocation8 + $0x78] sm:$0xff] %v1236
    %1381 = vst [vmem:[#allocation8 + $0x80] sm:$0xff] %v1237
    %1382 = vst [vmem:[#allocation8 + $0x88] sm:$0xff] %v1238
    %1383 = vst [vmem:[#allocation8 + $0x90] sm:$0xff] %v1239
    %1384 = vst [vmem:[#allocation8 + $0x98] sm:$0xff] %v1240
    %1385 = vst [vmem:[#allocation8 + $0xa0] sm:$0xff] %v1241
    %1386 = vst [vmem:[#allocation8 + $0xa8] sm:$0xff] %v1242
    %1387 = vst [vmem:[#allocation8 + $0xb0] sm:$0xff] %v1243
    %1388 = vst [vmem:[#allocation8 + $0xb8] sm:$0xff] %v1244
    %1389 = vst [vmem:[#allocation8 + $0xc0] sm:$0xff] %v1245
    %1390 = vst [vmem:[#allocation8 + $0xc8] sm:$0xff] %v1246
    %1391 = vst [vmem:[#allocation8 + $0xd0] sm:$0xff] %v1247
    %1392 = vst [vmem:[#allocation8 + $0xd8] sm:$0xff] %v1248
    %1393 = vst [vmem:[#allocation8 + $0xe0] sm:$0xff] %v1249
    %1394 = vst [vmem:[#allocation8 + $0xe8] sm:$0xff] %v1250
    %1395 = vst [vmem:[#allocation8 + $0xf0] sm:$0xff] %v1251
    %1396 = vst [vmem:[#allocation8 + $0xf8] sm:$0xff] %v1252
    %1397 = vst [vmem:[#allocation8 + $0x100] sm:$0xff] %v1253
    %1398 = vst [vmem:[#allocation8 + $0x108] sm:$0xff] %v1254
    %1399 = vst [vmem:[#allocation8 + $0x110] sm:$0xff] %v1255
    %1400 = vst [vmem:[#allocation8 + $0x118] sm:$0xff] %v1256
    %1401 = vst [vmem:[#allocation8 + $0x120] sm:$0xff] %v1257
    %1402 = vst [vmem:[#allocation8 + $0x128] sm:$0xff] %v1258
    %1403 = vst [vmem:[#allocation8 + $0x130] sm:$0xff] %v1259
    %1404 = vst [vmem:[#allocation8 + $0x138] sm:$0xff] %v1260
    %1405 = vst [vmem:[#allocation8 + $0x140] sm:$0xff] %v1261
    %1406 = vst [vmem:[#allocation8 + $0x148] sm:$0xff] %v1262
    %1407 = vst [vmem:[#allocation8 + $0x150] sm:$0xff] %v1263
    %1408 = vst [vmem:[#allocation8 + $0x158] sm:$0xff] %v1264
    %1409 = vst [vmem:[#allocation8 + $0x160] sm:$0xff] %v1265
    %1410 = vst [vmem:[#allocation8 + $0x168] sm:$0xff] %v1266
    %1411 = vst [vmem:[#allocation8 + $0x170] sm:$0xff] %v1267
    %1412 = vst [vmem:[#allocation8 + $0x178] sm:$0xff] %v1268
    %1413 = vst [vmem:[#allocation8 + $0x180] sm:$0xff] %v1269
    %1414 = vst [vmem:[#allocation8 + $0x188] sm:$0xff] %v1270
    %1415 = vst [vmem:[#allocation8 + $0x190] sm:$0xff] %v1271
    %1416 = vst [vmem:[#allocation8 + $0x198] sm:$0xff] %v1272
    %1417 = vst [vmem:[#allocation8 + $0x1a0] sm:$0xff] %v1273
    %1418 = vst [vmem:[#allocation8 + $0x1a8] sm:$0xff] %v1274
    %1419 = vst [vmem:[#allocation8 + $0x1b0] sm:$0xff] %v1275
    %1420 = vst [vmem:[#allocation8 + $0x1b8] sm:$0xff] %v1276
    %1421 = vst [vmem:[#allocation8 + $0x1c0] sm:$0xff] %v1277
    %1422 = vst [vmem:[#allocation8 + $0x1c8] sm:$0xff] %v1278
    %1423 = vst [vmem:[#allocation8 + $0x1d0] sm:$0xff] %v1279
    %1424 = vst [vmem:[#allocation8 + $0x1d8] sm:$0xff] %v1280
    %1425 = vst [vmem:[#allocation8 + $0x1e0] sm:$0xff] %v1281
    %1426 = vst [vmem:[#allocation8 + $0x1e8] sm:$0xff] %v1282
    %1427 = vst [vmem:[#allocation8 + $0x1f0] sm:$0xff] %v1283
    %1428 = vst [vmem:[#allocation8 + $0x1f8] sm:$0xff] %v1284
    %1429 = vst [vmem:[#allocation8 + $0x200] sm:$0xff] %v1285
    %1430 = vst [vmem:[#allocation8 + $0x208] sm:$0xff] %v1286
    %1431 = vst [vmem:[#allocation8 + $0x210] sm:$0xff] %v1287
    %1432 = vst [vmem:[#allocation8 + $0x218] sm:$0xff] %v1288
    %1433 = vst [vmem:[#allocation8 + $0x220] sm:$0xff] %v1289
    %1434 = vst [vmem:[#allocation8 + $0x228] sm:$0xff] %v1290
    %1435 = vst [vmem:[#allocation8 + $0x230] sm:$0xff] %v1291
    %1436 = vst [vmem:[#allocation8 + $0x238] sm:$0xff] %v1292
    // Predicated region
    $region26: #{tpu_custom_call.1} parent=1 // pred_check
      _
    $region27: #{tpu_custom_call.1} parent=1 // pred_check_branch
      %1438 = sbr.rel (0) target = $region29
    $region28: #{tpu_custom_call.1} parent=1 // pred_region
      %s1440 = ssub.s32 9216, 9216
      %1441 = vsyncadd [#allocation4], %s1440
      %s1442 = sshll.u32 [#allocation8], 4
      %s1443 = int_to_ptr.vmem [resolvable:$true] %s1442
      %1448 = dma.vmem_to_hbm [thread:$0]  %s1443, 9216, %s3, [#allocation4], 512, 512, 32
    $region29: #{tpu_custom_call.1} parent=1 // pred_fallthru
      _
    // Predicated region
    $region30: #{tpu_custom_call.1} parent=1 // pred_check
      _
    $region31: #{tpu_custom_call.1} parent=1 // pred_check_branch
      %1450 = sbr.rel (0) target = $region33
    $region32: #{tpu_custom_call.1} parent=1 // pred_region
      %1451 = dma.done [#allocation4], 9216
    $region33: #{tpu_custom_call.1} parent=1 // pred_fallthru
      _
    %1452 = vsyncpa [#allocation3], 1
    %1453 = vsyncpa [#allocation6], 1
    %1454 = vsyncpa [#allocation4], 1

</llo_original>
